<compile_context>
chip_gen: v7x
topology: tpu7x:2x2x1
jax: 0.10.0
libtpu: 0.0.40
codegen_flags: <defaults>
</compile_context>

<pallas_src>
import functools

import numpy as np

import jax
import jax.numpy as jnp
from jax.experimental import pallas as pl
from jax.experimental.pallas import tpu as pltpu


# --------------------------------------------------------------------------
# Kernel: tiled complex matmul  out = y @ M, accumulating straight into the
# resident f32 output blocks (no scratch, no finalize copy).
# --------------------------------------------------------------------------
def _cd_matmul_kernel(yre_ref, yim_ref, mre_ref, mim_ref, ore_ref, oim_ref):
    k = pl.program_id(2)

    @pl.when(k == 0)
    def _init():
        ore_ref[...] = jnp.zeros_like(ore_ref)
        oim_ref[...] = jnp.zeros_like(oim_ref)

    yre = yre_ref[...]
    yim = yim_ref[...]
    mre = mre_ref[...]
    mim = mim_ref[...]

    # (yre + i*yim) @ (mre + i*mim), accumulated in f32.
    ore_ref[...] += (jnp.dot(yre, mre, preferred_element_type=jnp.float32)
                     - jnp.dot(yim, mim, preferred_element_type=jnp.float32))
    oim_ref[...] += (jnp.dot(yre, mim, preferred_element_type=jnp.float32)
                     + jnp.dot(yim, mre, preferred_element_type=jnp.float32))


# --------------------------------------------------------------------------
# Host-side operator construction (cached; hoisted out of the per-call path).
# --------------------------------------------------------------------------
@functools.lru_cache(maxsize=16)
def _build_cd_operator(nt, ntp, dt, beta2, channel_length, dtype_name):
    """Fused operator M (padded to ntp x ntp) with  y @ M == ifft(fft(y)/H)."""
    dw = 2.0 * np.pi * np.fft.fftfreq(nt, d=dt * 1e12)
    linear_operator = np.exp(-1j * (beta2 / 2.0) * dw ** 2 * channel_length)
    h = np.fft.ifft(1.0 / linear_operator)             # complex128, length nt
    n = np.arange(nt)
    idx = np.mod(n[None, :] - n[:, None], nt)           # M[m, n] = h[(n-m) mod nt]
    M = np.zeros((ntp, ntp), dtype=np.complex128)
    M[:nt, :nt] = h[idx]
    return (jnp.asarray(M.real, dtype=jnp.float32).astype(dtype_name),
            jnp.asarray(M.imag, dtype=jnp.float32).astype(dtype_name))


def _round_up(x, m):
    return ((x + m - 1) // m) * m


def _device_info():
    """(vmem_capacity_bytes, row_tile_cap) with safe fallbacks."""
    try:
        cap = int(pltpu.get_tpu_info().vmem_capacity_bytes)
    except Exception:
        cap = 64 * 1024 * 1024          # conservative (v7x-sized) fallback
    try:
        kind = jax.devices()[0].device_kind.lower()
    except Exception:
        kind = ""
    tm_cap = 256 if ("v6" in kind or "v7" in kind) else 128
    return cap, tm_cap


def _pick_col_tiles(ntp, tm, in_bytes, budget):
    """Largest lane-aligned (tk, tn), reduction tile first (collapse k axis)."""
    cands = [d for d in range(ntp, 0, -128) if ntp % d == 0]

    def fits(tk, tn):
        req = (2 * 2 * tm * tk * in_bytes       # y re/im blocks, double-buffered
               + 2 * 2 * tk * tn * in_bytes     # M re/im blocks, double-buffered
               + 2 * 2 * tm * tn * 4)           # f32 out blocks, double-buffered
        return req <= budget

    for tk in cands:
        for tn in cands:
            if fits(tk, tn):
                return tk, tn
    return 128, 128


# --------------------------------------------------------------------------
# Wrapper: accepts a single 1-D complex signal (module semantics) or a
# (B, nt) batch of frames sharing the same channel parameters.
# --------------------------------------------------------------------------
def cd_compensation(y, dt, beta2, channel_length, *, compute_dtype=jnp.bfloat16):
    squeeze = (y.ndim == 1)
    if squeeze:
        y = y[None, :]
    B, nt = y.shape

    in_dtype = np.dtype(compute_dtype)
    in_bytes = in_dtype.itemsize
    sub = max(8, 32 // in_bytes)                 # 8 for f32, 16 for bf16 packing

    # Lane-align the signal length so every block is (8,128)-tileable.
    ntp = _round_up(nt, 128)

    mre, mim = _build_cd_operator(int(nt), int(ntp), float(dt), float(beta2),
                                  float(channel_length), in_dtype.name)

    vmem_cap, tm_cap = _device_info()
    vmem_limit = int(0.75 * vmem_cap)            # ~48 MiB on v7x, ~96 MiB on v5e/v6e
    budget = int(0.6 * vmem_limit)               # headroom for Mosaic internal scratch

    # Row padding / row tile: never a 1-row tile; 256-row tiles for big
    # batches on the 256-row MXUs (v6e/v7x), 128 elsewhere.
    if B <= 128:
        Bp = _round_up(max(B, sub), sub)
        tm = Bp
    else:
        tm = tm_cap if B >= tm_cap else 128
        Bp = _round_up(B, tm)

    yre = jnp.real(y).astype(in_dtype)
    yim = jnp.imag(y).astype(in_dtype)
    if Bp != B or ntp != nt:
        pad = ((0, Bp - B), (0, ntp - nt))
        yre = jnp.pad(yre, pad)
        yim = jnp.pad(yim, pad)

    tk, tn = _pick_col_tiles(ntp, tm, in_bytes, budget)
    grid = (Bp // tm, ntp // tn, ntp // tk)

    lhs_spec = pl.BlockSpec((tm, tk), lambda i, j, k: (i, k))
    rhs_spec = pl.BlockSpec((tk, tn), lambda i, j, k: (k, j))
    out_spec = pl.BlockSpec((tm, tn), lambda i, j, k: (i, j))

    out_re, out_im = pl.pallas_call(
        _cd_matmul_kernel,
        out_shape=(jax.ShapeDtypeStruct((Bp, ntp), jnp.float32),
                   jax.ShapeDtypeStruct((Bp, ntp), jnp.float32)),
        grid_spec=pltpu.PrefetchScalarGridSpec(
            num_scalar_prefetch=0,
            grid=grid,
            in_specs=[lhs_spec, lhs_spec,      # y re / im
                      rhs_spec, rhs_spec],     # fused operator re / im
            out_specs=(out_spec, out_spec),
        ),
        compiler_params=pltpu.CompilerParams(
            dimension_semantics=("parallel", "parallel", "arbitrary"),
            vmem_limit_bytes=vmem_limit),
    )(yre, yim, mre, mim)

    out = (out_re + 1j * out_im).astype(jnp.complex64)[:B, :nt]
    if squeeze:
        out = out[0]
    return out


# --------------------------------------------------------------------------
if __name__ == "__main__":
    # Module parameters (shapes implied by forward: a 1-D complex signal).
    dt = 1e-11              # 10 ps sample time [s]
    beta2 = -21.67          # dispersion coefficient [ps^2/km]
    channel_length = 50.0   # [km]
    nt = 512                # small sequence length
    B = 4                   # small batch of frames (amortizes operator traffic)

    key = jax.random.PRNGKey(0)
    k1, k2 = jax.random.split(key)
    y_batch = (jax.random.normal(k1, (B, nt), dtype=jnp.float32)
               + 1j * jax.random.normal(k2, (B, nt), dtype=jnp.float32)
               ).astype(jnp.complex64)

    # Pure-JAX reference of the PyTorch forward.
    dw = 2.0 * jnp.pi * jnp.fft.fftfreq(nt, d=dt * 1e12)
    lin = jnp.exp(-1j * (beta2 / 2.0) * dw ** 2 * channel_length)
    ref_batch = jnp.fft.ifft(jnp.fft.fft(y_batch, axis=-1) / lin[None, :],
                             axis=-1).astype(jnp.complex64)

    # --- f32 compute path: tight tolerance ------------------------------
    out_f32 = jax.block_until_ready(
        cd_compensation(y_batch, dt, beta2, channel_length,
                        compute_dtype=jnp.float32))
    assert out_f32.shape == (B, nt) and out_f32.dtype == jnp.complex64
    err_f32 = float(jnp.max(jnp.abs(out_f32 - ref_batch)))
    assert jnp.allclose(out_f32, ref_batch, atol=5e-3, rtol=5e-3), err_f32

    # --- default bf16 compute path: halves operator traffic -------------
    out_bf16 = jax.block_until_ready(
        cd_compensation(y_batch, dt, beta2, channel_length))
    assert out_bf16.shape == (B, nt) and out_bf16.dtype == jnp.complex64
    rel_l2 = float(jnp.linalg.norm(out_bf16 - ref_batch)
                   / jnp.linalg.norm(ref_batch))
    assert rel_l2 < 1e-2, rel_l2
    err_bf16 = float(jnp.max(jnp.abs(out_bf16 - ref_batch)))
    assert jnp.allclose(out_bf16, ref_batch, atol=3e-2, rtol=3e-2), err_bf16

    # --- single 1-D signal path (exact module semantics) ----------------
    y1 = y_batch[0]
    out1 = jax.block_until_ready(
        cd_compensation(y1, dt, beta2, channel_length,
                        compute_dtype=jnp.float32))
    assert out1.shape == (nt,) and out1.dtype == jnp.complex64
    err_1 = float(jnp.max(jnp.abs(out1 - ref_batch[0])))
    assert jnp.allclose(out1, ref_batch[0], atol=5e-3, rtol=5e-3), err_1

    print("KERNEL_OK")
</pallas_src>

<mosaic_0001>
module attributes {stable_mosaic.version = 11 : i64} {
  func.func @_cd_matmul_kernel(%arg0: i32, %arg1: i32, %arg2: i32, %arg3: memref<8x512xf32, #tpu.memory_space<vmem>>, %arg4: memref<8x512xf32, #tpu.memory_space<vmem>>, %arg5: memref<512x512xf32, #tpu.memory_space<vmem>>, %arg6: memref<512x512xf32, #tpu.memory_space<vmem>>, %arg7: memref<8x512xf32, #tpu.memory_space<vmem>>, %arg8: memref<8x512xf32, #tpu.memory_space<vmem>>) attributes {dimension_semantics = [#tpu.dimension_semantics<parallel>, #tpu.dimension_semantics<parallel>, #tpu.dimension_semantics<arbitrary>], iteration_bounds = array<i64: 1, 1, 1>, scalar_prefetch = 0 : i64, scratch_operands = 0 : i64, tpu.core_type = #tpu.core_type<tc>, window_params = [{transform_indices = @transform_0, window_bounds = array<i64: 8, 512>}, {transform_indices = @transform_1, window_bounds = array<i64: 8, 512>}, {transform_indices = @transform_2, window_bounds = array<i64: 512, 512>}, {transform_indices = @transform_3, window_bounds = array<i64: 512, 512>}, {transform_indices = @transform_4, window_bounds = array<i64: 8, 512>}, {transform_indices = @transform_5, window_bounds = array<i64: 8, 512>}]} {
    %c0_i32 = arith.constant 0 : i32
    %0 = arith.cmpi eq, %arg2, %c0_i32 : i32
    %1 = arith.extui %0 : i1 to i32
    %c0_i32_0 = arith.constant 0 : i32
    %2 = arith.cmpi ne, %1, %c0_i32_0 : i32
    scf.if %2 {
      %cst_19 = arith.constant 0.000000e+00 : f32
      %19 = vector.broadcast %cst_19 : f32 to vector<8x512xf32>
      %c0_20 = arith.constant 0 : index
      %c0_21 = arith.constant 0 : index
      %20 = vector.load %arg7[%c0_20, %c0_21] : memref<8x512xf32, #tpu.memory_space<vmem>>, vector<8x512xf32>
      tpu.vector_store %arg7[%c0_20, %c0_21], %19 {strides = array<i32>} : memref<8x512xf32, #tpu.memory_space<vmem>>, vector<8x512xf32>,
      %cst_22 = arith.constant 0.000000e+00 : f32
      %21 = vector.broadcast %cst_22 : f32 to vector<8x512xf32>
      %c0_23 = arith.constant 0 : index
      %c0_24 = arith.constant 0 : index
      %22 = vector.load %arg8[%c0_23, %c0_24] : memref<8x512xf32, #tpu.memory_space<vmem>>, vector<8x512xf32>
      tpu.vector_store %arg8[%c0_23, %c0_24], %21 {strides = array<i32>} : memref<8x512xf32, #tpu.memory_space<vmem>>, vector<8x512xf32>,
    } else {
    }
    %c0 = arith.constant 0 : index
    %c0_1 = arith.constant 0 : index
    %3 = vector.load %arg3[%c0, %c0_1] : memref<8x512xf32, #tpu.memory_space<vmem>>, vector<8x512xf32>
    %c0_2 = arith.constant 0 : index
    %c0_3 = arith.constant 0 : index
    %4 = vector.load %arg4[%c0_2, %c0_3] : memref<8x512xf32, #tpu.memory_space<vmem>>, vector<8x512xf32>
    %c0_4 = arith.constant 0 : index
    %c0_5 = arith.constant 0 : index
    %5 = vector.load %arg5[%c0_4, %c0_5] : memref<512x512xf32, #tpu.memory_space<vmem>>, vector<512x512xf32>
    %c0_6 = arith.constant 0 : index
    %c0_7 = arith.constant 0 : index
    %6 = vector.load %arg6[%c0_6, %c0_7] : memref<512x512xf32, #tpu.memory_space<vmem>>, vector<512x512xf32>
    %c0_8 = arith.constant 0 : index
    %c0_9 = arith.constant 0 : index
    %7 = vector.load %arg7[%c0_8, %c0_9] : memref<8x512xf32, #tpu.memory_space<vmem>>, vector<8x512xf32>
    %cst = arith.constant dense<0.000000e+00> : vector<8x512xf32>
    %8 = tpu.matmul %3, %5, %cst {dimension_numbers = #tpu.dot_dimension_numbers<[1], [0], [0], [1], [0, 0, 1, 1], [], []>} : vector<8x512xf32>, vector<512x512xf32>, vector<8x512xf32> -> vector<8x512xf32>
    %cst_10 = arith.constant dense<0.000000e+00> : vector<8x512xf32>
    %9 = tpu.matmul %4, %6, %cst_10 {dimension_numbers = #tpu.dot_dimension_numbers<[1], [0], [0], [1], [0, 0, 1, 1], [], []>} : vector<8x512xf32>, vector<512x512xf32>, vector<8x512xf32> -> vector<8x512xf32>
    %10 = arith.subf %8, %9 : vector<8x512xf32>
    %11 = arith.addf %7, %10 : vector<8x512xf32>
    %c0_11 = arith.constant 0 : index
    %c0_12 = arith.constant 0 : index
    %12 = vector.load %arg7[%c0_11, %c0_12] : memref<8x512xf32, #tpu.memory_space<vmem>>, vector<8x512xf32>
    tpu.vector_store %arg7[%c0_11, %c0_12], %11 {strides = array<i32>} : memref<8x512xf32, #tpu.memory_space<vmem>>, vector<8x512xf32>,
    %c0_13 = arith.constant 0 : index
    %c0_14 = arith.constant 0 : index
    %13 = vector.load %arg8[%c0_13, %c0_14] : memref<8x512xf32, #tpu.memory_space<vmem>>, vector<8x512xf32>
    %cst_15 = arith.constant dense<0.000000e+00> : vector<8x512xf32>
    %14 = tpu.matmul %3, %6, %cst_15 {dimension_numbers = #tpu.dot_dimension_numbers<[1], [0], [0], [1], [0, 0, 1, 1], [], []>} : vector<8x512xf32>, vector<512x512xf32>, vector<8x512xf32> -> vector<8x512xf32>
    %cst_16 = arith.constant dense<0.000000e+00> : vector<8x512xf32>
    %15 = tpu.matmul %4, %5, %cst_16 {dimension_numbers = #tpu.dot_dimension_numbers<[1], [0], [0], [1], [0, 0, 1, 1], [], []>} : vector<8x512xf32>, vector<512x512xf32>, vector<8x512xf32> -> vector<8x512xf32>
    %16 = arith.addf %14, %15 : vector<8x512xf32>
    %17 = arith.addf %13, %16 : vector<8x512xf32>
    %c0_17 = arith.constant 0 : index
    %c0_18 = arith.constant 0 : index
    %18 = vector.load %arg8[%c0_17, %c0_18] : memref<8x512xf32, #tpu.memory_space<vmem>>, vector<8x512xf32>
    tpu.vector_store %arg8[%c0_17, %c0_18], %17 {strides = array<i32>} : memref<8x512xf32, #tpu.memory_space<vmem>>, vector<8x512xf32>,
    return
  }
  func.func @transform_0(%arg0: i32, %arg1: i32, %arg2: i32) -> (i32, i32) {
    %c0_i32 = arith.constant 0 : i32
    return %arg0, %arg2 : i32, i32
  }
  func.func @transform_1(%arg0: i32, %arg1: i32, %arg2: i32) -> (i32, i32) {
    %c0_i32 = arith.constant 0 : i32
    return %arg0, %arg2 : i32, i32
  }
  func.func @transform_2(%arg0: i32, %arg1: i32, %arg2: i32) -> (i32, i32) {
    %c0_i32 = arith.constant 0 : i32
    return %arg2, %arg1 : i32, i32
  }
  func.func @transform_3(%arg0: i32, %arg1: i32, %arg2: i32) -> (i32, i32) {
    %c0_i32 = arith.constant 0 : i32
    return %arg2, %arg1 : i32, i32
  }
  func.func @transform_4(%arg0: i32, %arg1: i32, %arg2: i32) -> (i32, i32) {
    %c0_i32 = arith.constant 0 : i32
    return %arg0, %arg1 : i32, i32
  }
  func.func @transform_5(%arg0: i32, %arg1: i32, %arg2: i32) -> (i32, i32) {
    %c0_i32 = arith.constant 0 : i32
    return %arg0, %arg1 : i32, i32
  }
}

</mosaic_0001>

<llo_original>
// kernel: tpu_custom_call.1
$region0: #{tpu_custom_call.1}
  #allocation0 [shape = 'u32[]', space=smem, size = 0x4, offset = 0x4, fixed_abs, tag = 'smem constant byte address 0x4 - core index']
  #allocation1 [shape = 'u32[144,128]{1,0:T(1,128)}', space=vmem, size = 0x12000, scoped, tag = 'internal scratch']
  %s0 = inlined_call_operand.hbm [shape: f32[8,512], index: 0, kind: input, shape index: {}]
  %s1 = inlined_call_operand.hbm [shape: f32[8,512], index: 1, kind: input, shape index: {}]
  %s2 = inlined_call_operand.hbm [shape: f32[512,512], index: 2, kind: input, shape index: {}]
  %s3 = inlined_call_operand.hbm [shape: f32[512,512], index: 3, kind: input, shape index: {}]
  %s4 = inlined_call_operand.hbm [shape: f32[8,512], index: 4, kind: output, shape index: {0}]
  %s5 = inlined_call_operand.hbm [shape: f32[8,512], index: 5, kind: output, shape index: {1}]
  %6 = xla_tuple %s4, %s5
  %s7 = sld [smem:[#allocation0]]
  $region54: #{tpu_custom_call.1} parent=0
    _
  %s9 = ssub.s32 1, %s7
  %s10 = scalar_select 0, %s9, %s7
  $region1: #{tpu_custom_call.1} parent=0
    #allocation2 [shape = 'u8[16384]{0}', space=vmem, size = 0x4000, scoped, tag = 'input window, operand 0, single buffered']
    #allocation3 [shape = 's32[1]{0}', space=sflag, size = 0x4, scoped, tag = 'scoped memory for tpu_custom_call.1']
    #allocation4 [shape = 's32[1]{0}', space=sflag, size = 0x4, scoped, tag = 'scoped memory for tpu_custom_call.1']
    #allocation5 [shape = 'u8[16384]{0}', space=vmem, size = 0x4000, scoped, tag = 'input window, operand 1, single buffered']
    #allocation6 [shape = 's32[1]{0}', space=sflag, size = 0x4, scoped, tag = 'scoped memory for tpu_custom_call.1']
    #allocation7 [shape = 'u8[1048576]{0}', space=vmem, size = 0x100000, scoped, tag = 'input window, operand 2, single buffered']
    #allocation8 [shape = 'u8[1048576]{0}', space=vmem, size = 0x100000, scoped, tag = 'input window, operand 3, single buffered']
    #allocation9 [shape = 's32[1]{0}', space=sflag, size = 0x4, scoped, tag = 'scoped memory for tpu_custom_call.1']
    #allocation10 [shape = 'u8[16384]{0}', space=vmem, size = 0x4000, scoped, tag = 'output window, operand 0, single buffered']
    #allocation11 [shape = 'u8[16384]{0}', space=vmem, size = 0x4000, scoped, tag = 'output window, operand 1, single buffered']
    #allocation12 [shape = 's32[1]{0}', space=sflag, size = 0x4, scoped, tag = 'scoped memory for tpu_custom_call.1']
    %11 = vsyncpa [#allocation3], 0
    %12 = vsyncpa [#allocation6], 0
    %13 = vsyncpa [#allocation9], 0
    %14 = vsyncpa [#allocation4], 0
    %15 = vsyncpa [#allocation12], 0
    // Predicated region
    $region2: #{tpu_custom_call.1} parent=1 // pred_check
      _
    $region3: #{tpu_custom_call.1} parent=1 // pred_check_branch
      %17 = sbr.rel (0) target = $region5
    $region4: #{tpu_custom_call.1} parent=1 // pred_region
      %s19 = ssub.s32 512, 512
      %20 = vsyncadd [#allocation3], %s19
      %s22 = sshll.u32 [#allocation2], 4
      %s23 = int_to_ptr.vmem [resolvable:$true] %s22
      %25 = dma.hbm_to_vmem [thread:$0]  %s0, 512, %s23, [#allocation3]
    $region5: #{tpu_custom_call.1} parent=1 // pred_fallthru
      _
    // Predicated region
    $region6: #{tpu_custom_call.1} parent=1 // pred_check
      _
    $region7: #{tpu_custom_call.1} parent=1 // pred_check_branch
      %27 = sbr.rel (0) target = $region9
    $region8: #{tpu_custom_call.1} parent=1 // pred_region
      %s29 = ssub.s32 512, 512
      %30 = vsyncadd [#allocation6], %s29
      %s32 = sshll.u32 [#allocation5], 4
      %s33 = int_to_ptr.vmem [resolvable:$true] %s32
      %35 = dma.hbm_to_vmem [thread:$0]  %s1, 512, %s33, [#allocation6]
    $region9: #{tpu_custom_call.1} parent=1 // pred_fallthru
      _
    // Predicated region
    $region10: #{tpu_custom_call.1} parent=1 // pred_check
      _
    $region11: #{tpu_custom_call.1} parent=1 // pred_check_branch
      %37 = sbr.rel (0) target = $region13
    $region12: #{tpu_custom_call.1} parent=1 // pred_region
      %s39 = ssub.s32 32768, 32768
      %40 = vsyncadd [#allocation6], %s39
      %s41 = sshll.u32 [#allocation7], 4
      %s42 = int_to_ptr.vmem [resolvable:$true] %s41
      %47 = dma.hbm_to_vmem [thread:$0]  %s2, 32768, %s42, [#allocation6], 512, 512, 32
    $region13: #{tpu_custom_call.1} parent=1 // pred_fallthru
      _
    // Predicated region
    $region14: #{tpu_custom_call.1} parent=1 // pred_check
      _
    $region15: #{tpu_custom_call.1} parent=1 // pred_check_branch
      %49 = sbr.rel (0) target = $region17
    $region16: #{tpu_custom_call.1} parent=1 // pred_region
      %s51 = ssub.s32 32768, 32768
      %52 = vsyncadd [#allocation9], %s51
      %s53 = sshll.u32 [#allocation8], 4
      %s54 = int_to_ptr.vmem [resolvable:$true] %s53
      %59 = dma.hbm_to_vmem [thread:$0]  %s3, 32768, %s54, [#allocation9], 512, 512, 32
    $region17: #{tpu_custom_call.1} parent=1 // pred_fallthru
      _
    // Predicated region
    $region18: #{tpu_custom_call.1} parent=1 // pred_check
      _
    $region19: #{tpu_custom_call.1} parent=1 // pred_check_branch
      %61 = sbr.rel (0) target = $region21
    $region20: #{tpu_custom_call.1} parent=1 // pred_region
      %62 = dma.done [#allocation3], 512
    $region21: #{tpu_custom_call.1} parent=1 // pred_fallthru
      _
    // Predicated region
    $region22: #{tpu_custom_call.1} parent=1 // pred_check
      _
    $region23: #{tpu_custom_call.1} parent=1 // pred_check_branch
      %64 = sbr.rel (0) target = $region25
    $region24: #{tpu_custom_call.1} parent=1 // pred_region
      %65 = dma.done [#allocation6], 512
    $region25: #{tpu_custom_call.1} parent=1 // pred_fallthru
      _
    // Predicated region
    $region26: #{tpu_custom_call.1} parent=1 // pred_check
      _
    $region27: #{tpu_custom_call.1} parent=1 // pred_check_branch
      %67 = sbr.rel (0) target = $region29
    $region28: #{tpu_custom_call.1} parent=1 // pred_region
      %68 = dma.done [#allocation6], 32768
    $region29: #{tpu_custom_call.1} parent=1 // pred_fallthru
      _
    // Predicated region
    $region30: #{tpu_custom_call.1} parent=1 // pred_check
      _
    $region31: #{tpu_custom_call.1} parent=1 // pred_check_branch
      %70 = sbr.rel (0) target = $region33
    $region32: #{tpu_custom_call.1} parent=1 // pred_region
      %71 = dma.done [#allocation9], 32768
    $region33: #{tpu_custom_call.1} parent=1 // pred_fallthru
      _
    %p72 = scmp.eq.s32.totalorder 0, 0
    // Predicated region
    $region34: #{tpu_custom_call.1} parent=1 // pred_check
      %p73 = pneg %p72
    $region35: #{tpu_custom_call.1} parent=1 // pred_check_branch
      %75 = sbr.rel (%p73) target = $region37
    $region36: #{tpu_custom_call.1} parent=1 // pred_region
      %76 = vst [vmem:[#allocation10] sm:$0xff] 0.0
      %77 = vst [vmem:[#allocation10 + $0x8] sm:$0xff] 0.0
      %78 = vst [vmem:[#allocation10 + $0x10] sm:$0xff] 0.0
      %79 = vst [vmem:[#allocation10 + $0x18] sm:$0xff] 0.0
      %80 = vst [vmem:[#allocation11] sm:$0xff] 0.0
      %81 = vst [vmem:[#allocation11 + $0x8] sm:$0xff] 0.0
      %82 = vst [vmem:[#allocation11 + $0x10] sm:$0xff] 0.0
      %83 = vst [vmem:[#allocation11 + $0x18] sm:$0xff] 0.0
    $region37: #{tpu_custom_call.1} parent=1 // pred_fallthru
      _
    %v84 = vld [vmem:[#allocation2] sm:$0xff]
    %v85 = vld [vmem:[#allocation2 + $0x8] sm:$0xff]
    %v86 = vld [vmem:[#allocation2 + $0x10] sm:$0xff]
    %v87 = vld [vmem:[#allocation2 + $0x18] sm:$0xff]
    %v88 = vld [vmem:[#allocation5] sm:$0xff]
    %v89 = vld [vmem:[#allocation5 + $0x8] sm:$0xff]
    %v90 = vld [vmem:[#allocation5 + $0x10] sm:$0xff]
    %v91 = vld [vmem:[#allocation5 + $0x18] sm:$0xff]
    %v92 = vld [vmem:[#allocation7] sm:$0xff]
    %v93 = vld [vmem:[#allocation7 + $0x8] sm:$0xff]
    %v94 = vld [vmem:[#allocation7 + $0x10] sm:$0xff]
    %v95 = vld [vmem:[#allocation7 + $0x18] sm:$0xff]
    %v96 = vld [vmem:[#allocation7 + $0x20] sm:$0xff]
    %v97 = vld [vmem:[#allocation7 + $0x28] sm:$0xff]
    %v98 = vld [vmem:[#allocation7 + $0x30] sm:$0xff]
    %v99 = vld [vmem:[#allocation7 + $0x38] sm:$0xff]
    %v100 = vld [vmem:[#allocation7 + $0x40] sm:$0xff]
    %v101 = vld [vmem:[#allocation7 + $0x48] sm:$0xff]
    %v102 = vld [vmem:[#allocation7 + $0x50] sm:$0xff]
    %v103 = vld [vmem:[#allocation7 + $0x58] sm:$0xff]
    %v104 = vld [vmem:[#allocation7 + $0x60] sm:$0xff]
    %v105 = vld [vmem:[#allocation7 + $0x68] sm:$0xff]
    %v106 = vld [vmem:[#allocation7 + $0x70] sm:$0xff]
    %v107 = vld [vmem:[#allocation7 + $0x78] sm:$0xff]
    %v108 = vld [vmem:[#allocation7 + $0x80] sm:$0xff]
    %v109 = vld [vmem:[#allocation7 + $0x88] sm:$0xff]
    %v110 = vld [vmem:[#allocation7 + $0x90] sm:$0xff]
    %v111 = vld [vmem:[#allocation7 + $0x98] sm:$0xff]
    %v112 = vld [vmem:[#allocation7 + $0xa0] sm:$0xff]
    %v113 = vld [vmem:[#allocation7 + $0xa8] sm:$0xff]
    %v114 = vld [vmem:[#allocation7 + $0xb0] sm:$0xff]
    %v115 = vld [vmem:[#allocation7 + $0xb8] sm:$0xff]
    %v116 = vld [vmem:[#allocation7 + $0xc0] sm:$0xff]
    %v117 = vld [vmem:[#allocation7 + $0xc8] sm:$0xff]
    %v118 = vld [vmem:[#allocation7 + $0xd0] sm:$0xff]
    %v119 = vld [vmem:[#allocation7 + $0xd8] sm:$0xff]
    %v120 = vld [vmem:[#allocation7 + $0xe0] sm:$0xff]
    %v121 = vld [vmem:[#allocation7 + $0xe8] sm:$0xff]
    %v122 = vld [vmem:[#allocation7 + $0xf0] sm:$0xff]
    %v123 = vld [vmem:[#allocation7 + $0xf8] sm:$0xff]
    %v124 = vld [vmem:[#allocation7 + $0x100] sm:$0xff]
    %v125 = vld [vmem:[#allocation7 + $0x108] sm:$0xff]
    %v126 = vld [vmem:[#allocation7 + $0x110] sm:$0xff]
    %v127 = vld [vmem:[#allocation7 + $0x118] sm:$0xff]
    %v128 = vld [vmem:[#allocation7 + $0x120] sm:$0xff]
    %v129 = vld [vmem:[#allocation7 + $0x128] sm:$0xff]
    %v130 = vld [vmem:[#allocation7 + $0x130] sm:$0xff]
    %v131 = vld [vmem:[#allocation7 + $0x138] sm:$0xff]
    %v132 = vld [vmem:[#allocation7 + $0x140] sm:$0xff]
    %v133 = vld [vmem:[#allocation7 + $0x148] sm:$0xff]
    %v134 = vld [vmem:[#allocation7 + $0x150] sm:$0xff]
    %v135 = vld [vmem:[#allocation7 + $0x158] sm:$0xff]
    %v136 = vld [vmem:[#allocation7 + $0x160] sm:$0xff]
    %v137 = vld [vmem:[#allocation7 + $0x168] sm:$0xff]
    %v138 = vld [vmem:[#allocation7 + $0x170] sm:$0xff]
    %v139 = vld [vmem:[#allocation7 + $0x178] sm:$0xff]
    %v140 = vld [vmem:[#allocation7 + $0x180] sm:$0xff]
    %v141 = vld [vmem:[#allocation7 + $0x188] sm:$0xff]
    %v142 = vld [vmem:[#allocation7 + $0x190] sm:$0xff]
    %v143 = vld [vmem:[#allocation7 + $0x198] sm:$0xff]
    %v144 = vld [vmem:[#allocation7 + $0x1a0] sm:$0xff]
    %v145 = vld [vmem:[#allocation7 + $0x1a8] sm:$0xff]
    %v146 = vld [vmem:[#allocation7 + $0x1b0] sm:$0xff]
    %v147 = vld [vmem:[#allocation7 + $0x1b8] sm:$0xff]
    %v148 = vld [vmem:[#allocation7 + $0x1c0] sm:$0xff]
    %v149 = vld [vmem:[#allocation7 + $0x1c8] sm:$0xff]
    %v150 = vld [vmem:[#allocation7 + $0x1d0] sm:$0xff]
    %v151 = vld [vmem:[#allocation7 + $0x1d8] sm:$0xff]
    %v152 = vld [vmem:[#allocation7 + $0x1e0] sm:$0xff]
    %v153 = vld [vmem:[#allocation7 + $0x1e8] sm:$0xff]
    %v154 = vld [vmem:[#allocation7 + $0x1f0] sm:$0xff]
    %v155 = vld [vmem:[#allocation7 + $0x1f8] sm:$0xff]
    %v156 = vld [vmem:[#allocation7 + $0x200] sm:$0xff]
    %v157 = vld [vmem:[#allocation7 + $0x208] sm:$0xff]
    %v158 = vld [vmem:[#allocation7 + $0x210] sm:$0xff]
    %v159 = vld [vmem:[#allocation7 + $0x218] sm:$0xff]
    %v160 = vld [vmem:[#allocation7 + $0x220] sm:$0xff]
    %v161 = vld [vmem:[#allocation7 + $0x228] sm:$0xff]
    %v162 = vld [vmem:[#allocation7 + $0x230] sm:$0xff]
    %v163 = vld [vmem:[#allocation7 + $0x238] sm:$0xff]
    %v164 = vld [vmem:[#allocation7 + $0x240] sm:$0xff]
    %v165 = vld [vmem:[#allocation7 + $0x248] sm:$0xff]
    %v166 = vld [vmem:[#allocation7 + $0x250] sm:$0xff]
    %v167 = vld [vmem:[#allocation7 + $0x258] sm:$0xff]
    %v168 = vld [vmem:[#allocation7 + $0x260] sm:$0xff]
    %v169 = vld [vmem:[#allocation7 + $0x268] sm:$0xff]
    %v170 = vld [vmem:[#allocation7 + $0x270] sm:$0xff]
    %v171 = vld [vmem:[#allocation7 + $0x278] sm:$0xff]
    %v172 = vld [vmem:[#allocation7 + $0x280] sm:$0xff]
    %v173 = vld [vmem:[#allocation7 + $0x288] sm:$0xff]
    %v174 = vld [vmem:[#allocation7 + $0x290] sm:$0xff]
    %v175 = vld [vmem:[#allocation7 + $0x298] sm:$0xff]
    %v176 = vld [vmem:[#allocation7 + $0x2a0] sm:$0xff]
    %v177 = vld [vmem:[#allocation7 + $0x2a8] sm:$0xff]
    %v178 = vld [vmem:[#allocation7 + $0x2b0] sm:$0xff]
    %v179 = vld [vmem:[#allocation7 + $0x2b8] sm:$0xff]
    %v180 = vld [vmem:[#allocation7 + $0x2c0] sm:$0xff]
    %v181 = vld [vmem:[#allocation7 + $0x2c8] sm:$0xff]
    %v182 = vld [vmem:[#allocation7 + $0x2d0] sm:$0xff]
    %v183 = vld [vmem:[#allocation7 + $0x2d8] sm:$0xff]
    %v184 = vld [vmem:[#allocation7 + $0x2e0] sm:$0xff]
    %v185 = vld [vmem:[#allocation7 + $0x2e8] sm:$0xff]
    %v186 = vld [vmem:[#allocation7 + $0x2f0] sm:$0xff]
    %v187 = vld [vmem:[#allocation7 + $0x2f8] sm:$0xff]
    %v188 = vld [vmem:[#allocation7 + $0x300] sm:$0xff]
    %v189 = vld [vmem:[#allocation7 + $0x308] sm:$0xff]
    %v190 = vld [vmem:[#allocation7 + $0x310] sm:$0xff]
    %v191 = vld [vmem:[#allocation7 + $0x318] sm:$0xff]
    %v192 = vld [vmem:[#allocation7 + $0x320] sm:$0xff]
    %v193 = vld [vmem:[#allocation7 + $0x328] sm:$0xff]
    %v194 = vld [vmem:[#allocation7 + $0x330] sm:$0xff]
    %v195 = vld [vmem:[#allocation7 + $0x338] sm:$0xff]
    %v196 = vld [vmem:[#allocation7 + $0x340] sm:$0xff]
    %v197 = vld [vmem:[#allocation7 + $0x348] sm:$0xff]
    %v198 = vld [vmem:[#allocation7 + $0x350] sm:$0xff]
    %v199 = vld [vmem:[#allocation7 + $0x358] sm:$0xff]
    %v200 = vld [vmem:[#allocation7 + $0x360] sm:$0xff]
    %v201 = vld [vmem:[#allocation7 + $0x368] sm:$0xff]
    %v202 = vld [vmem:[#allocation7 + $0x370] sm:$0xff]
    %v203 = vld [vmem:[#allocation7 + $0x378] sm:$0xff]
    %v204 = vld [vmem:[#allocation7 + $0x380] sm:$0xff]
    %v205 = vld [vmem:[#allocation7 + $0x388] sm:$0xff]
    %v206 = vld [vmem:[#allocation7 + $0x390] sm:$0xff]
    %v207 = vld [vmem:[#allocation7 + $0x398] sm:$0xff]
    %v208 = vld [vmem:[#allocation7 + $0x3a0] sm:$0xff]
    %v209 = vld [vmem:[#allocation7 + $0x3a8] sm:$0xff]
    %v210 = vld [vmem:[#allocation7 + $0x3b0] sm:$0xff]
    %v211 = vld [vmem:[#allocation7 + $0x3b8] sm:$0xff]
    %v212 = vld [vmem:[#allocation7 + $0x3c0] sm:$0xff]
    %v213 = vld [vmem:[#allocation7 + $0x3c8] sm:$0xff]
    %v214 = vld [vmem:[#allocation7 + $0x3d0] sm:$0xff]
    %v215 = vld [vmem:[#allocation7 + $0x3d8] sm:$0xff]
    %v216 = vld [vmem:[#allocation7 + $0x3e0] sm:$0xff]
    %v217 = vld [vmem:[#allocation7 + $0x3e8] sm:$0xff]
    %v218 = vld [vmem:[#allocation7 + $0x3f0] sm:$0xff]
    %v219 = vld [vmem:[#allocation7 + $0x3f8] sm:$0xff]
    %v220 = vld [vmem:[#allocation7 + $0x400] sm:$0xff]
    %v221 = vld [vmem:[#allocation7 + $0x408] sm:$0xff]
    %v222 = vld [vmem:[#allocation7 + $0x410] sm:$0xff]
    %v223 = vld [vmem:[#allocation7 + $0x418] sm:$0xff]
    %v224 = vld [vmem:[#allocation7 + $0x420] sm:$0xff]
    %v225 = vld [vmem:[#allocation7 + $0x428] sm:$0xff]
    %v226 = vld [vmem:[#allocation7 + $0x430] sm:$0xff]
    %v227 = vld [vmem:[#allocation7 + $0x438] sm:$0xff]
    %v228 = vld [vmem:[#allocation7 + $0x440] sm:$0xff]
    %v229 = vld [vmem:[#allocation7 + $0x448] sm:$0xff]
    %v230 = vld [vmem:[#allocation7 + $0x450] sm:$0xff]
    %v231 = vld [vmem:[#allocation7 + $0x458] sm:$0xff]
    %v232 = vld [vmem:[#allocation7 + $0x460] sm:$0xff]
    %v233 = vld [vmem:[#allocation7 + $0x468] sm:$0xff]
    %v234 = vld [vmem:[#allocation7 + $0x470] sm:$0xff]
    %v235 = vld [vmem:[#allocation7 + $0x478] sm:$0xff]
    %v236 = vld [vmem:[#allocation7 + $0x480] sm:$0xff]
    %v237 = vld [vmem:[#allocation7 + $0x488] sm:$0xff]
    %v238 = vld [vmem:[#allocation7 + $0x490] sm:$0xff]
    %v239 = vld [vmem:[#allocation7 + $0x498] sm:$0xff]
    %v240 = vld [vmem:[#allocation7 + $0x4a0] sm:$0xff]
    %v241 = vld [vmem:[#allocation7 + $0x4a8] sm:$0xff]
    %v242 = vld [vmem:[#allocation7 + $0x4b0] sm:$0xff]
    %v243 = vld [vmem:[#allocation7 + $0x4b8] sm:$0xff]
    %v244 = vld [vmem:[#allocation7 + $0x4c0] sm:$0xff]
    %v245 = vld [vmem:[#allocation7 + $0x4c8] sm:$0xff]
    %v246 = vld [vmem:[#allocation7 + $0x4d0] sm:$0xff]
    %v247 = vld [vmem:[#allocation7 + $0x4d8] sm:$0xff]
    %v248 = vld [vmem:[#allocation7 + $0x4e0] sm:$0xff]
    %v249 = vld [vmem:[#allocation7 + $0x4e8] sm:$0xff]
    %v250 = vld [vmem:[#allocation7 + $0x4f0] sm:$0xff]
    %v251 = vld [vmem:[#allocation7 + $0x4f8] sm:$0xff]
    %v252 = vld [vmem:[#allocation7 + $0x500] sm:$0xff]
    %v253 = vld [vmem:[#allocation7 + $0x508] sm:$0xff]
    %v254 = vld [vmem:[#allocation7 + $0x510] sm:$0xff]
    %v255 = vld [vmem:[#allocation7 + $0x518] sm:$0xff]
    %v256 = vld [vmem:[#allocation7 + $0x520] sm:$0xff]
    %v257 = vld [vmem:[#allocation7 + $0x528] sm:$0xff]
    %v258 = vld [vmem:[#allocation7 + $0x530] sm:$0xff]
    %v259 = vld [vmem:[#allocation7 + $0x538] sm:$0xff]
    %v260 = vld [vmem:[#allocation7 + $0x540] sm:$0xff]
    %v261 = vld [vmem:[#allocation7 + $0x548] sm:$0xff]
    %v262 = vld [vmem:[#allocation7 + $0x550] sm:$0xff]
    %v263 = vld [vmem:[#allocation7 + $0x558] sm:$0xff]
    %v264 = vld [vmem:[#allocation7 + $0x560] sm:$0xff]
    %v265 = vld [vmem:[#allocation7 + $0x568] sm:$0xff]
    %v266 = vld [vmem:[#allocation7 + $0x570] sm:$0xff]
    %v267 = vld [vmem:[#allocation7 + $0x578] sm:$0xff]
    %v268 = vld [vmem:[#allocation7 + $0x580] sm:$0xff]
    %v269 = vld [vmem:[#allocation7 + $0x588] sm:$0xff]
    %v270 = vld [vmem:[#allocation7 + $0x590] sm:$0xff]
    %v271 = vld [vmem:[#allocation7 + $0x598] sm:$0xff]
    %v272 = vld [vmem:[#allocation7 + $0x5a0] sm:$0xff]
    %v273 = vld [vmem:[#allocation7 + $0x5a8] sm:$0xff]
    %v274 = vld [vmem:[#allocation7 + $0x5b0] sm:$0xff]
    %v275 = vld [vmem:[#allocation7 + $0x5b8] sm:$0xff]
    %v276 = vld [vmem:[#allocation7 + $0x5c0] sm:$0xff]
    %v277 = vld [vmem:[#allocation7 + $0x5c8] sm:$0xff]
    %v278 = vld [vmem:[#allocation7 + $0x5d0] sm:$0xff]
    %v279 = vld [vmem:[#allocation7 + $0x5d8] sm:$0xff]
    %v280 = vld [vmem:[#allocation7 + $0x5e0] sm:$0xff]
    %v281 = vld [vmem:[#allocation7 + $0x5e8] sm:$0xff]
    %v282 = vld [vmem:[#allocation7 + $0x5f0] sm:$0xff]
    %v283 = vld [vmem:[#allocation7 + $0x5f8] sm:$0xff]
    %v284 = vld [vmem:[#allocation7 + $0x600] sm:$0xff]
    %v285 = vld [vmem:[#allocation7 + $0x608] sm:$0xff]
    %v286 = vld [vmem:[#allocation7 + $0x610] sm:$0xff]
    %v287 = vld [vmem:[#allocation7 + $0x618] sm:$0xff]
    %v288 = vld [vmem:[#allocation7 + $0x620] sm:$0xff]
    %v289 = vld [vmem:[#allocation7 + $0x628] sm:$0xff]
    %v290 = vld [vmem:[#allocation7 + $0x630] sm:$0xff]
    %v291 = vld [vmem:[#allocation7 + $0x638] sm:$0xff]
    %v292 = vld [vmem:[#allocation7 + $0x640] sm:$0xff]
    %v293 = vld [vmem:[#allocation7 + $0x648] sm:$0xff]
    %v294 = vld [vmem:[#allocation7 + $0x650] sm:$0xff]
    %v295 = vld [vmem:[#allocation7 + $0x658] sm:$0xff]
    %v296 = vld [vmem:[#allocation7 + $0x660] sm:$0xff]
    %v297 = vld [vmem:[#allocation7 + $0x668] sm:$0xff]
    %v298 = vld [vmem:[#allocation7 + $0x670] sm:$0xff]
    %v299 = vld [vmem:[#allocation7 + $0x678] sm:$0xff]
    %v300 = vld [vmem:[#allocation7 + $0x680] sm:$0xff]
    %v301 = vld [vmem:[#allocation7 + $0x688] sm:$0xff]
    %v302 = vld [vmem:[#allocation7 + $0x690] sm:$0xff]
    %v303 = vld [vmem:[#allocation7 + $0x698] sm:$0xff]
    %v304 = vld [vmem:[#allocation7 + $0x6a0] sm:$0xff]
    %v305 = vld [vmem:[#allocation7 + $0x6a8] sm:$0xff]
    %v306 = vld [vmem:[#allocation7 + $0x6b0] sm:$0xff]
    %v307 = vld [vmem:[#allocation7 + $0x6b8] sm:$0xff]
    %v308 = vld [vmem:[#allocation7 + $0x6c0] sm:$0xff]
    %v309 = vld [vmem:[#allocation7 + $0x6c8] sm:$0xff]
    %v310 = vld [vmem:[#allocation7 + $0x6d0] sm:$0xff]
    %v311 = vld [vmem:[#allocation7 + $0x6d8] sm:$0xff]
    %v312 = vld [vmem:[#allocation7 + $0x6e0] sm:$0xff]
    %v313 = vld [vmem:[#allocation7 + $0x6e8] sm:$0xff]
    %v314 = vld [vmem:[#allocation7 + $0x6f0] sm:$0xff]
    %v315 = vld [vmem:[#allocation7 + $0x6f8] sm:$0xff]
    %v316 = vld [vmem:[#allocation7 + $0x700] sm:$0xff]
    %v317 = vld [vmem:[#allocation7 + $0x708] sm:$0xff]
    %v318 = vld [vmem:[#allocation7 + $0x710] sm:$0xff]
    %v319 = vld [vmem:[#allocation7 + $0x718] sm:$0xff]
    %v320 = vld [vmem:[#allocation7 + $0x720] sm:$0xff]
    %v321 = vld [vmem:[#allocation7 + $0x728] sm:$0xff]
    %v322 = vld [vmem:[#allocation7 + $0x730] sm:$0xff]
    %v323 = vld [vmem:[#allocation7 + $0x738] sm:$0xff]
    %v324 = vld [vmem:[#allocation7 + $0x740] sm:$0xff]
    %v325 = vld [vmem:[#allocation7 + $0x748] sm:$0xff]
    %v326 = vld [vmem:[#allocation7 + $0x750] sm:$0xff]
    %v327 = vld [vmem:[#allocation7 + $0x758] sm:$0xff]
    %v328 = vld [vmem:[#allocation7 + $0x760] sm:$0xff]
    %v329 = vld [vmem:[#allocation7 + $0x768] sm:$0xff]
    %v330 = vld [vmem:[#allocation7 + $0x770] sm:$0xff]
    %v331 = vld [vmem:[#allocation7 + $0x778] sm:$0xff]
    %v332 = vld [vmem:[#allocation7 + $0x780] sm:$0xff]
    %v333 = vld [vmem:[#allocation7 + $0x788] sm:$0xff]
    %v334 = vld [vmem:[#allocation7 + $0x790] sm:$0xff]
    %v335 = vld [vmem:[#allocation7 + $0x798] sm:$0xff]
    %v336 = vld [vmem:[#allocation7 + $0x7a0] sm:$0xff]
    %v337 = vld [vmem:[#allocation7 + $0x7a8] sm:$0xff]
    %v338 = vld [vmem:[#allocation7 + $0x7b0] sm:$0xff]
    %v339 = vld [vmem:[#allocation7 + $0x7b8] sm:$0xff]
    %v340 = vld [vmem:[#allocation7 + $0x7c0] sm:$0xff]
    %v341 = vld [vmem:[#allocation7 + $0x7c8] sm:$0xff]
    %v342 = vld [vmem:[#allocation7 + $0x7d0] sm:$0xff]
    %v343 = vld [vmem:[#allocation7 + $0x7d8] sm:$0xff]
    %v344 = vld [vmem:[#allocation7 + $0x7e0] sm:$0xff]
    %v345 = vld [vmem:[#allocation7 + $0x7e8] sm:$0xff]
    %v346 = vld [vmem:[#allocation7 + $0x7f0] sm:$0xff]
    %v347 = vld [vmem:[#allocation7 + $0x7f8] sm:$0xff]
    %v348 = vld [vmem:[#allocation8] sm:$0xff]
    %v349 = vld [vmem:[#allocation8 + $0x8] sm:$0xff]
    %v350 = vld [vmem:[#allocation8 + $0x10] sm:$0xff]
    %v351 = vld [vmem:[#allocation8 + $0x18] sm:$0xff]
    %v352 = vld [vmem:[#allocation8 + $0x20] sm:$0xff]
    %v353 = vld [vmem:[#allocation8 + $0x28] sm:$0xff]
    %v354 = vld [vmem:[#allocation8 + $0x30] sm:$0xff]
    %v355 = vld [vmem:[#allocation8 + $0x38] sm:$0xff]
    %v356 = vld [vmem:[#allocation8 + $0x40] sm:$0xff]
    %v357 = vld [vmem:[#allocation8 + $0x48] sm:$0xff]
    %v358 = vld [vmem:[#allocation8 + $0x50] sm:$0xff]
    %v359 = vld [vmem:[#allocation8 + $0x58] sm:$0xff]
    %v360 = vld [vmem:[#allocation8 + $0x60] sm:$0xff]
    %v361 = vld [vmem:[#allocation8 + $0x68] sm:$0xff]
    %v362 = vld [vmem:[#allocation8 + $0x70] sm:$0xff]
    %v363 = vld [vmem:[#allocation8 + $0x78] sm:$0xff]
    %v364 = vld [vmem:[#allocation8 + $0x80] sm:$0xff]
    %v365 = vld [vmem:[#allocation8 + $0x88] sm:$0xff]
    %v366 = vld [vmem:[#allocation8 + $0x90] sm:$0xff]
    %v367 = vld [vmem:[#allocation8 + $0x98] sm:$0xff]
    %v368 = vld [vmem:[#allocation8 + $0xa0] sm:$0xff]
    %v369 = vld [vmem:[#allocation8 + $0xa8] sm:$0xff]
    %v370 = vld [vmem:[#allocation8 + $0xb0] sm:$0xff]
    %v371 = vld [vmem:[#allocation8 + $0xb8] sm:$0xff]
    %v372 = vld [vmem:[#allocation8 + $0xc0] sm:$0xff]
    %v373 = vld [vmem:[#allocation8 + $0xc8] sm:$0xff]
    %v374 = vld [vmem:[#allocation8 + $0xd0] sm:$0xff]
    %v375 = vld [vmem:[#allocation8 + $0xd8] sm:$0xff]
    %v376 = vld [vmem:[#allocation8 + $0xe0] sm:$0xff]
    %v377 = vld [vmem:[#allocation8 + $0xe8] sm:$0xff]
    %v378 = vld [vmem:[#allocation8 + $0xf0] sm:$0xff]
    %v379 = vld [vmem:[#allocation8 + $0xf8] sm:$0xff]
    %v380 = vld [vmem:[#allocation8 + $0x100] sm:$0xff]
    %v381 = vld [vmem:[#allocation8 + $0x108] sm:$0xff]
    %v382 = vld [vmem:[#allocation8 + $0x110] sm:$0xff]
    %v383 = vld [vmem:[#allocation8 + $0x118] sm:$0xff]
    %v384 = vld [vmem:[#allocation8 + $0x120] sm:$0xff]
    %v385 = vld [vmem:[#allocation8 + $0x128] sm:$0xff]
    %v386 = vld [vmem:[#allocation8 + $0x130] sm:$0xff]
    %v387 = vld [vmem:[#allocation8 + $0x138] sm:$0xff]
    %v388 = vld [vmem:[#allocation8 + $0x140] sm:$0xff]
    %v389 = vld [vmem:[#allocation8 + $0x148] sm:$0xff]
    %v390 = vld [vmem:[#allocation8 + $0x150] sm:$0xff]
    %v391 = vld [vmem:[#allocation8 + $0x158] sm:$0xff]
    %v392 = vld [vmem:[#allocation8 + $0x160] sm:$0xff]
    %v393 = vld [vmem:[#allocation8 + $0x168] sm:$0xff]
    %v394 = vld [vmem:[#allocation8 + $0x170] sm:$0xff]
    %v395 = vld [vmem:[#allocation8 + $0x178] sm:$0xff]
    %v396 = vld [vmem:[#allocation8 + $0x180] sm:$0xff]
    %v397 = vld [vmem:[#allocation8 + $0x188] sm:$0xff]
    %v398 = vld [vmem:[#allocation8 + $0x190] sm:$0xff]
    %v399 = vld [vmem:[#allocation8 + $0x198] sm:$0xff]
    %v400 = vld [vmem:[#allocation8 + $0x1a0] sm:$0xff]
    %v401 = vld [vmem:[#allocation8 + $0x1a8] sm:$0xff]
    %v402 = vld [vmem:[#allocation8 + $0x1b0] sm:$0xff]
    %v403 = vld [vmem:[#allocation8 + $0x1b8] sm:$0xff]
    %v404 = vld [vmem:[#allocation8 + $0x1c0] sm:$0xff]
    %v405 = vld [vmem:[#allocation8 + $0x1c8] sm:$0xff]
    %v406 = vld [vmem:[#allocation8 + $0x1d0] sm:$0xff]
    %v407 = vld [vmem:[#allocation8 + $0x1d8] sm:$0xff]
    %v408 = vld [vmem:[#allocation8 + $0x1e0] sm:$0xff]
    %v409 = vld [vmem:[#allocation8 + $0x1e8] sm:$0xff]
    %v410 = vld [vmem:[#allocation8 + $0x1f0] sm:$0xff]
    %v411 = vld [vmem:[#allocation8 + $0x1f8] sm:$0xff]
    %v412 = vld [vmem:[#allocation8 + $0x200] sm:$0xff]
    %v413 = vld [vmem:[#allocation8 + $0x208] sm:$0xff]
    %v414 = vld [vmem:[#allocation8 + $0x210] sm:$0xff]
    %v415 = vld [vmem:[#allocation8 + $0x218] sm:$0xff]
    %v416 = vld [vmem:[#allocation8 + $0x220] sm:$0xff]
    %v417 = vld [vmem:[#allocation8 + $0x228] sm:$0xff]
    %v418 = vld [vmem:[#allocation8 + $0x230] sm:$0xff]
    %v419 = vld [vmem:[#allocation8 + $0x238] sm:$0xff]
    %v420 = vld [vmem:[#allocation8 + $0x240] sm:$0xff]
    %v421 = vld [vmem:[#allocation8 + $0x248] sm:$0xff]
    %v422 = vld [vmem:[#allocation8 + $0x250] sm:$0xff]
    %v423 = vld [vmem:[#allocation8 + $0x258] sm:$0xff]
    %v424 = vld [vmem:[#allocation8 + $0x260] sm:$0xff]
    %v425 = vld [vmem:[#allocation8 + $0x268] sm:$0xff]
    %v426 = vld [vmem:[#allocation8 + $0x270] sm:$0xff]
    %v427 = vld [vmem:[#allocation8 + $0x278] sm:$0xff]
    %v428 = vld [vmem:[#allocation8 + $0x280] sm:$0xff]
    %v429 = vld [vmem:[#allocation8 + $0x288] sm:$0xff]
    %v430 = vld [vmem:[#allocation8 + $0x290] sm:$0xff]
    %v431 = vld [vmem:[#allocation8 + $0x298] sm:$0xff]
    %v432 = vld [vmem:[#allocation8 + $0x2a0] sm:$0xff]
    %v433 = vld [vmem:[#allocation8 + $0x2a8] sm:$0xff]
    %v434 = vld [vmem:[#allocation8 + $0x2b0] sm:$0xff]
    %v435 = vld [vmem:[#allocation8 + $0x2b8] sm:$0xff]
    %v436 = vld [vmem:[#allocation8 + $0x2c0] sm:$0xff]
    %v437 = vld [vmem:[#allocation8 + $0x2c8] sm:$0xff]
    %v438 = vld [vmem:[#allocation8 + $0x2d0] sm:$0xff]
    %v439 = vld [vmem:[#allocation8 + $0x2d8] sm:$0xff]
    %v440 = vld [vmem:[#allocation8 + $0x2e0] sm:$0xff]
    %v441 = vld [vmem:[#allocation8 + $0x2e8] sm:$0xff]
    %v442 = vld [vmem:[#allocation8 + $0x2f0] sm:$0xff]
    %v443 = vld [vmem:[#allocation8 + $0x2f8] sm:$0xff]
    %v444 = vld [vmem:[#allocation8 + $0x300] sm:$0xff]
    %v445 = vld [vmem:[#allocation8 + $0x308] sm:$0xff]
    %v446 = vld [vmem:[#allocation8 + $0x310] sm:$0xff]
    %v447 = vld [vmem:[#allocation8 + $0x318] sm:$0xff]
    %v448 = vld [vmem:[#allocation8 + $0x320] sm:$0xff]
    %v449 = vld [vmem:[#allocation8 + $0x328] sm:$0xff]
    %v450 = vld [vmem:[#allocation8 + $0x330] sm:$0xff]
    %v451 = vld [vmem:[#allocation8 + $0x338] sm:$0xff]
    %v452 = vld [vmem:[#allocation8 + $0x340] sm:$0xff]
    %v453 = vld [vmem:[#allocation8 + $0x348] sm:$0xff]
    %v454 = vld [vmem:[#allocation8 + $0x350] sm:$0xff]
    %v455 = vld [vmem:[#allocation8 + $0x358] sm:$0xff]
    %v456 = vld [vmem:[#allocation8 + $0x360] sm:$0xff]
    %v457 = vld [vmem:[#allocation8 + $0x368] sm:$0xff]
    %v458 = vld [vmem:[#allocation8 + $0x370] sm:$0xff]
    %v459 = vld [vmem:[#allocation8 + $0x378] sm:$0xff]
    %v460 = vld [vmem:[#allocation8 + $0x380] sm:$0xff]
    %v461 = vld [vmem:[#allocation8 + $0x388] sm:$0xff]
    %v462 = vld [vmem:[#allocation8 + $0x390] sm:$0xff]
    %v463 = vld [vmem:[#allocation8 + $0x398] sm:$0xff]
    %v464 = vld [vmem:[#allocation8 + $0x3a0] sm:$0xff]
    %v465 = vld [vmem:[#allocation8 + $0x3a8] sm:$0xff]
    %v466 = vld [vmem:[#allocation8 + $0x3b0] sm:$0xff]
    %v467 = vld [vmem:[#allocation8 + $0x3b8] sm:$0xff]
    %v468 = vld [vmem:[#allocation8 + $0x3c0] sm:$0xff]
    %v469 = vld [vmem:[#allocation8 + $0x3c8] sm:$0xff]
    %v470 = vld [vmem:[#allocation8 + $0x3d0] sm:$0xff]
    %v471 = vld [vmem:[#allocation8 + $0x3d8] sm:$0xff]
    %v472 = vld [vmem:[#allocation8 + $0x3e0] sm:$0xff]
    %v473 = vld [vmem:[#allocation8 + $0x3e8] sm:$0xff]
    %v474 = vld [vmem:[#allocation8 + $0x3f0] sm:$0xff]
    %v475 = vld [vmem:[#allocation8 + $0x3f8] sm:$0xff]
    %v476 = vld [vmem:[#allocation8 + $0x400] sm:$0xff]
    %v477 = vld [vmem:[#allocation8 + $0x408] sm:$0xff]
    %v478 = vld [vmem:[#allocation8 + $0x410] sm:$0xff]
    %v479 = vld [vmem:[#allocation8 + $0x418] sm:$0xff]
    %v480 = vld [vmem:[#allocation8 + $0x420] sm:$0xff]
    %v481 = vld [vmem:[#allocation8 + $0x428] sm:$0xff]
    %v482 = vld [vmem:[#allocation8 + $0x430] sm:$0xff]
    %v483 = vld [vmem:[#allocation8 + $0x438] sm:$0xff]
    %v484 = vld [vmem:[#allocation8 + $0x440] sm:$0xff]
    %v485 = vld [vmem:[#allocation8 + $0x448] sm:$0xff]
    %v486 = vld [vmem:[#allocation8 + $0x450] sm:$0xff]
    %v487 = vld [vmem:[#allocation8 + $0x458] sm:$0xff]
    %v488 = vld [vmem:[#allocation8 + $0x460] sm:$0xff]
    %v489 = vld [vmem:[#allocation8 + $0x468] sm:$0xff]
    %v490 = vld [vmem:[#allocation8 + $0x470] sm:$0xff]
    %v491 = vld [vmem:[#allocation8 + $0x478] sm:$0xff]
    %v492 = vld [vmem:[#allocation8 + $0x480] sm:$0xff]
    %v493 = vld [vmem:[#allocation8 + $0x488] sm:$0xff]
    %v494 = vld [vmem:[#allocation8 + $0x490] sm:$0xff]
    %v495 = vld [vmem:[#allocation8 + $0x498] sm:$0xff]
    %v496 = vld [vmem:[#allocation8 + $0x4a0] sm:$0xff]
    %v497 = vld [vmem:[#allocation8 + $0x4a8] sm:$0xff]
    %v498 = vld [vmem:[#allocation8 + $0x4b0] sm:$0xff]
    %v499 = vld [vmem:[#allocation8 + $0x4b8] sm:$0xff]
    %v500 = vld [vmem:[#allocation8 + $0x4c0] sm:$0xff]
    %v501 = vld [vmem:[#allocation8 + $0x4c8] sm:$0xff]
    %v502 = vld [vmem:[#allocation8 + $0x4d0] sm:$0xff]
    %v503 = vld [vmem:[#allocation8 + $0x4d8] sm:$0xff]
    %v504 = vld [vmem:[#allocation8 + $0x4e0] sm:$0xff]
    %v505 = vld [vmem:[#allocation8 + $0x4e8] sm:$0xff]
    %v506 = vld [vmem:[#allocation8 + $0x4f0] sm:$0xff]
    %v507 = vld [vmem:[#allocation8 + $0x4f8] sm:$0xff]
    %v508 = vld [vmem:[#allocation8 + $0x500] sm:$0xff]
    %v509 = vld [vmem:[#allocation8 + $0x508] sm:$0xff]
    %v510 = vld [vmem:[#allocation8 + $0x510] sm:$0xff]
    %v511 = vld [vmem:[#allocation8 + $0x518] sm:$0xff]
    %v512 = vld [vmem:[#allocation8 + $0x520] sm:$0xff]
    %v513 = vld [vmem:[#allocation8 + $0x528] sm:$0xff]
    %v514 = vld [vmem:[#allocation8 + $0x530] sm:$0xff]
    %v515 = vld [vmem:[#allocation8 + $0x538] sm:$0xff]
    %v516 = vld [vmem:[#allocation8 + $0x540] sm:$0xff]
    %v517 = vld [vmem:[#allocation8 + $0x548] sm:$0xff]
    %v518 = vld [vmem:[#allocation8 + $0x550] sm:$0xff]
    %v519 = vld [vmem:[#allocation8 + $0x558] sm:$0xff]
    %v520 = vld [vmem:[#allocation8 + $0x560] sm:$0xff]
    %v521 = vld [vmem:[#allocation8 + $0x568] sm:$0xff]
    %v522 = vld [vmem:[#allocation8 + $0x570] sm:$0xff]
    %v523 = vld [vmem:[#allocation8 + $0x578] sm:$0xff]
    %v524 = vld [vmem:[#allocation8 + $0x580] sm:$0xff]
    %v525 = vld [vmem:[#allocation8 + $0x588] sm:$0xff]
    %v526 = vld [vmem:[#allocation8 + $0x590] sm:$0xff]
    %v527 = vld [vmem:[#allocation8 + $0x598] sm:$0xff]
    %v528 = vld [vmem:[#allocation8 + $0x5a0] sm:$0xff]
    %v529 = vld [vmem:[#allocation8 + $0x5a8] sm:$0xff]
    %v530 = vld [vmem:[#allocation8 + $0x5b0] sm:$0xff]
    %v531 = vld [vmem:[#allocation8 + $0x5b8] sm:$0xff]
    %v532 = vld [vmem:[#allocation8 + $0x5c0] sm:$0xff]
    %v533 = vld [vmem:[#allocation8 + $0x5c8] sm:$0xff]
    %v534 = vld [vmem:[#allocation8 + $0x5d0] sm:$0xff]
    %v535 = vld [vmem:[#allocation8 + $0x5d8] sm:$0xff]
    %v536 = vld [vmem:[#allocation8 + $0x5e0] sm:$0xff]
    %v537 = vld [vmem:[#allocation8 + $0x5e8] sm:$0xff]
    %v538 = vld [vmem:[#allocation8 + $0x5f0] sm:$0xff]
    %v539 = vld [vmem:[#allocation8 + $0x5f8] sm:$0xff]
    %v540 = vld [vmem:[#allocation8 + $0x600] sm:$0xff]
    %v541 = vld [vmem:[#allocation8 + $0x608] sm:$0xff]
    %v542 = vld [vmem:[#allocation8 + $0x610] sm:$0xff]
    %v543 = vld [vmem:[#allocation8 + $0x618] sm:$0xff]
    %v544 = vld [vmem:[#allocation8 + $0x620] sm:$0xff]
    %v545 = vld [vmem:[#allocation8 + $0x628] sm:$0xff]
    %v546 = vld [vmem:[#allocation8 + $0x630] sm:$0xff]
    %v547 = vld [vmem:[#allocation8 + $0x638] sm:$0xff]
    %v548 = vld [vmem:[#allocation8 + $0x640] sm:$0xff]
    %v549 = vld [vmem:[#allocation8 + $0x648] sm:$0xff]
    %v550 = vld [vmem:[#allocation8 + $0x650] sm:$0xff]
    %v551 = vld [vmem:[#allocation8 + $0x658] sm:$0xff]
    %v552 = vld [vmem:[#allocation8 + $0x660] sm:$0xff]
    %v553 = vld [vmem:[#allocation8 + $0x668] sm:$0xff]
    %v554 = vld [vmem:[#allocation8 + $0x670] sm:$0xff]
    %v555 = vld [vmem:[#allocation8 + $0x678] sm:$0xff]
    %v556 = vld [vmem:[#allocation8 + $0x680] sm:$0xff]
    %v557 = vld [vmem:[#allocation8 + $0x688] sm:$0xff]
    %v558 = vld [vmem:[#allocation8 + $0x690] sm:$0xff]
    %v559 = vld [vmem:[#allocation8 + $0x698] sm:$0xff]
    %v560 = vld [vmem:[#allocation8 + $0x6a0] sm:$0xff]
    %v561 = vld [vmem:[#allocation8 + $0x6a8] sm:$0xff]
    %v562 = vld [vmem:[#allocation8 + $0x6b0] sm:$0xff]
    %v563 = vld [vmem:[#allocation8 + $0x6b8] sm:$0xff]
    %v564 = vld [vmem:[#allocation8 + $0x6c0] sm:$0xff]
    %v565 = vld [vmem:[#allocation8 + $0x6c8] sm:$0xff]
    %v566 = vld [vmem:[#allocation8 + $0x6d0] sm:$0xff]
    %v567 = vld [vmem:[#allocation8 + $0x6d8] sm:$0xff]
    %v568 = vld [vmem:[#allocation8 + $0x6e0] sm:$0xff]
    %v569 = vld [vmem:[#allocation8 + $0x6e8] sm:$0xff]
    %v570 = vld [vmem:[#allocation8 + $0x6f0] sm:$0xff]
    %v571 = vld [vmem:[#allocation8 + $0x6f8] sm:$0xff]
    %v572 = vld [vmem:[#allocation8 + $0x700] sm:$0xff]
    %v573 = vld [vmem:[#allocation8 + $0x708] sm:$0xff]
    %v574 = vld [vmem:[#allocation8 + $0x710] sm:$0xff]
    %v575 = vld [vmem:[#allocation8 + $0x718] sm:$0xff]
    %v576 = vld [vmem:[#allocation8 + $0x720] sm:$0xff]
    %v577 = vld [vmem:[#allocation8 + $0x728] sm:$0xff]
    %v578 = vld [vmem:[#allocation8 + $0x730] sm:$0xff]
    %v579 = vld [vmem:[#allocation8 + $0x738] sm:$0xff]
    %v580 = vld [vmem:[#allocation8 + $0x740] sm:$0xff]
    %v581 = vld [vmem:[#allocation8 + $0x748] sm:$0xff]
    %v582 = vld [vmem:[#allocation8 + $0x750] sm:$0xff]
    %v583 = vld [vmem:[#allocation8 + $0x758] sm:$0xff]
    %v584 = vld [vmem:[#allocation8 + $0x760] sm:$0xff]
    %v585 = vld [vmem:[#allocation8 + $0x768] sm:$0xff]
    %v586 = vld [vmem:[#allocation8 + $0x770] sm:$0xff]
    %v587 = vld [vmem:[#allocation8 + $0x778] sm:$0xff]
    %v588 = vld [vmem:[#allocation8 + $0x780] sm:$0xff]
    %v589 = vld [vmem:[#allocation8 + $0x788] sm:$0xff]
    %v590 = vld [vmem:[#allocation8 + $0x790] sm:$0xff]
    %v591 = vld [vmem:[#allocation8 + $0x798] sm:$0xff]
    %v592 = vld [vmem:[#allocation8 + $0x7a0] sm:$0xff]
    %v593 = vld [vmem:[#allocation8 + $0x7a8] sm:$0xff]
    %v594 = vld [vmem:[#allocation8 + $0x7b0] sm:$0xff]
    %v595 = vld [vmem:[#allocation8 + $0x7b8] sm:$0xff]
    %v596 = vld [vmem:[#allocation8 + $0x7c0] sm:$0xff]
    %v597 = vld [vmem:[#allocation8 + $0x7c8] sm:$0xff]
    %v598 = vld [vmem:[#allocation8 + $0x7d0] sm:$0xff]
    %v599 = vld [vmem:[#allocation8 + $0x7d8] sm:$0xff]
    %v600 = vld [vmem:[#allocation8 + $0x7e0] sm:$0xff]
    %v601 = vld [vmem:[#allocation8 + $0x7e8] sm:$0xff]
    %v602 = vld [vmem:[#allocation8 + $0x7f0] sm:$0xff]
    %v603 = vld [vmem:[#allocation8 + $0x7f8] sm:$0xff]
    %v604 = vld [vmem:[#allocation10] sm:$0xff]
    %v605 = vld [vmem:[#allocation10 + $0x8] sm:$0xff]
    %v606 = vld [vmem:[#allocation10 + $0x10] sm:$0xff]
    %v607 = vld [vmem:[#allocation10 + $0x18] sm:$0xff]
    %608 = vmatprep.subr.mxu0 %v93
    %609 = vmatpush1.msra.mxu0 %v92
    %610 = vmatprep.subr.mxu0 %v97
    %611 = vmatpush1.msra.mxu0 %v96
    %612 = vmatprep.subr.mxu0 %v101
    %613 = vmatpush1.msra.mxu0 %v100
    %614 = vmatprep.subr.mxu0 %v105
    %615 = vmatpush1.msra.mxu0 %v104
    %616 = vmatprep.subr.mxu0 %v109
    %617 = vmatpush1.msra.mxu0 %v108
    %618 = vmatprep.subr.mxu0 %v113
    %619 = vmatpush1.msra.mxu0 %v112
    %620 = vmatprep.subr.mxu0 %v117
    %621 = vmatpush1.msra.mxu0 %v116
    %622 = vmatprep.subr.mxu0 %v121
    %623 = vmatpush1.msra.mxu0 %v120
    %624 = vmatprep.subr.mxu0 %v125
    %625 = vmatpush1.msra.mxu0 %v124
    %626 = vmatprep.subr.mxu0 %v129
    %627 = vmatpush1.msra.mxu0 %v128
    %628 = vmatprep.subr.mxu0 %v133
    %629 = vmatpush1.msra.mxu0 %v132
    %630 = vmatprep.subr.mxu0 %v137
    %631 = vmatpush1.msra.mxu0 %v136
    %632 = vmatprep.subr.mxu0 %v141
    %633 = vmatpush1.msra.mxu0 %v140
    %634 = vmatprep.subr.mxu0 %v145
    %635 = vmatpush1.msra.mxu0 %v144
    %636 = vmatprep.subr.mxu0 %v149
    %637 = vmatpush1.msra.mxu0 %v148
    %638 = vmatprep.subr.mxu0 %v153
    %639 = vmatpush1.msra.mxu0 %v152
    %640 = vmatprep.subr.mxu0 %v157
    %641 = vmatpush1.msra.mxu0 %v156
    %642 = vmatprep.subr.mxu0 %v161
    %643 = vmatpush1.msra.mxu0 %v160
    %644 = vmatprep.subr.mxu0 %v165
    %645 = vmatpush1.msra.mxu0 %v164
    %646 = vmatprep.subr.mxu0 %v169
    %647 = vmatpush1.msra.mxu0 %v168
    %648 = vmatprep.subr.mxu0 %v173
    %649 = vmatpush1.msra.mxu0 %v172
    %650 = vmatprep.subr.mxu0 %v177
    %651 = vmatpush1.msra.mxu0 %v176
    %652 = vmatprep.subr.mxu0 %v181
    %653 = vmatpush1.msra.mxu0 %v180
    %654 = vmatprep.subr.mxu0 %v185
    %655 = vmatpush1.msra.mxu0 %v184
    %656 = vmatprep.subr.mxu0 %v189
    %657 = vmatpush1.msra.mxu0 %v188
    %658 = vmatprep.subr.mxu0 %v193
    %659 = vmatpush1.msra.mxu0 %v192
    %660 = vmatprep.subr.mxu0 %v197
    %661 = vmatpush1.msra.mxu0 %v196
    %662 = vmatprep.subr.mxu0 %v201
    %663 = vmatpush1.msra.mxu0 %v200
    %664 = vmatprep.subr.mxu0 %v205
    %665 = vmatpush1.msra.mxu0 %v204
    %666 = vmatprep.subr.mxu0 %v209
    %667 = vmatpush1.msra.mxu0 %v208
    %668 = vmatprep.subr.mxu0 %v213
    %669 = vmatpush1.msra.mxu0 %v212
    %670 = vmatprep.subr.mxu0 %v217
    %671 = vmatpush1.msra.mxu0 %v216
    %672 = vmatprep.mubr.f32.mxu0 %v85
    %673 = vmatmul.mubr.f32.gmra.mrb[0].mxu0 %v84
    %v674 = vpop.f32.mrb[0].mxu0
    %v675 = vadd.f32 0.0, %v674
    %v676 = vpop.f32.mrb[0].mxu0
    %v677 = vadd.f32 0.0, %v676
    %678 = vdwg.mxu0
    %679 = vmatprep.subr.mxu0 %v221
    %680 = vmatpush1.msra.mxu0 %v220
    %681 = vmatprep.subr.mxu0 %v225
    %682 = vmatpush1.msra.mxu0 %v224
    %683 = vmatprep.subr.mxu0 %v229
    %684 = vmatpush1.msra.mxu0 %v228
    %685 = vmatprep.subr.mxu0 %v233
    %686 = vmatpush1.msra.mxu0 %v232
    %687 = vmatprep.subr.mxu0 %v237
    %688 = vmatpush1.msra.mxu0 %v236
    %689 = vmatprep.subr.mxu0 %v241
    %690 = vmatpush1.msra.mxu0 %v240
    %691 = vmatprep.subr.mxu0 %v245
    %692 = vmatpush1.msra.mxu0 %v244
    %693 = vmatprep.subr.mxu0 %v249
    %694 = vmatpush1.msra.mxu0 %v248
    %695 = vmatprep.subr.mxu0 %v253
    %696 = vmatpush1.msra.mxu0 %v252
    %697 = vmatprep.subr.mxu0 %v257
    %698 = vmatpush1.msra.mxu0 %v256
    %699 = vmatprep.subr.mxu0 %v261
    %700 = vmatpush1.msra.mxu0 %v260
    %701 = vmatprep.subr.mxu0 %v265
    %702 = vmatpush1.msra.mxu0 %v264
    %703 = vmatprep.subr.mxu0 %v269
    %704 = vmatpush1.msra.mxu0 %v268
    %705 = vmatprep.subr.mxu0 %v273
    %706 = vmatpush1.msra.mxu0 %v272
    %707 = vmatprep.subr.mxu0 %v277
    %708 = vmatpush1.msra.mxu0 %v276
    %709 = vmatprep.subr.mxu0 %v281
    %710 = vmatpush1.msra.mxu0 %v280
    %711 = vmatprep.subr.mxu0 %v285
    %712 = vmatpush1.msra.mxu0 %v284
    %713 = vmatprep.subr.mxu0 %v289
    %714 = vmatpush1.msra.mxu0 %v288
    %715 = vmatprep.subr.mxu0 %v293
    %716 = vmatpush1.msra.mxu0 %v292
    %717 = vmatprep.subr.mxu0 %v297
    %718 = vmatpush1.msra.mxu0 %v296
    %719 = vmatprep.subr.mxu0 %v301
    %720 = vmatpush1.msra.mxu0 %v300
    %721 = vmatprep.subr.mxu0 %v305
    %722 = vmatpush1.msra.mxu0 %v304
    %723 = vmatprep.subr.mxu0 %v309
    %724 = vmatpush1.msra.mxu0 %v308
    %725 = vmatprep.subr.mxu0 %v313
    %726 = vmatpush1.msra.mxu0 %v312
    %727 = vmatprep.subr.mxu0 %v317
    %728 = vmatpush1.msra.mxu0 %v316
    %729 = vmatprep.subr.mxu0 %v321
    %730 = vmatpush1.msra.mxu0 %v320
    %731 = vmatprep.subr.mxu0 %v325
    %732 = vmatpush1.msra.mxu0 %v324
    %733 = vmatprep.subr.mxu0 %v329
    %734 = vmatpush1.msra.mxu0 %v328
    %735 = vmatprep.subr.mxu0 %v333
    %736 = vmatpush1.msra.mxu0 %v332
    %737 = vmatprep.subr.mxu0 %v337
    %738 = vmatpush1.msra.mxu0 %v336
    %739 = vmatprep.subr.mxu0 %v341
    %740 = vmatpush1.msra.mxu0 %v340
    %741 = vmatprep.subr.mxu0 %v345
    %742 = vmatpush1.msra.mxu0 %v344
    %743 = vmatprep.mubr.f32.mxu0 %v87
    %744 = vmatmul.mubr.f32.gmra.mrb[0].mxu0 %v86
    %v745 = vpop.f32.mrb[0].mxu0
    %v746 = vadd.f32 %v675, %v745
    %v747 = vpop.f32.mrb[0].mxu0
    %v748 = vadd.f32 %v677, %v747
    %749 = vdwg.mxu0
    %750 = vmatprep.subr.mxu0 %v95
    %751 = vmatpush1.msra.mxu0 %v94
    %752 = vmatprep.subr.mxu0 %v99
    %753 = vmatpush1.msra.mxu0 %v98
    %754 = vmatprep.subr.mxu0 %v103
    %755 = vmatpush1.msra.mxu0 %v102
    %756 = vmatprep.subr.mxu0 %v107
    %757 = vmatpush1.msra.mxu0 %v106
    %758 = vmatprep.subr.mxu0 %v111
    %759 = vmatpush1.msra.mxu0 %v110
    %760 = vmatprep.subr.mxu0 %v115
    %761 = vmatpush1.msra.mxu0 %v114
    %762 = vmatprep.subr.mxu0 %v119
    %763 = vmatpush1.msra.mxu0 %v118
    %764 = vmatprep.subr.mxu0 %v123
    %765 = vmatpush1.msra.mxu0 %v122
    %766 = vmatprep.subr.mxu0 %v127
    %767 = vmatpush1.msra.mxu0 %v126
    %768 = vmatprep.subr.mxu0 %v131
    %769 = vmatpush1.msra.mxu0 %v130
    %770 = vmatprep.subr.mxu0 %v135
    %771 = vmatpush1.msra.mxu0 %v134
    %772 = vmatprep.subr.mxu0 %v139
    %773 = vmatpush1.msra.mxu0 %v138
    %774 = vmatprep.subr.mxu0 %v143
    %775 = vmatpush1.msra.mxu0 %v142
    %776 = vmatprep.subr.mxu0 %v147
    %777 = vmatpush1.msra.mxu0 %v146
    %778 = vmatprep.subr.mxu0 %v151
    %779 = vmatpush1.msra.mxu0 %v150
    %780 = vmatprep.subr.mxu0 %v155
    %781 = vmatpush1.msra.mxu0 %v154
    %782 = vmatprep.subr.mxu0 %v159
    %783 = vmatpush1.msra.mxu0 %v158
    %784 = vmatprep.subr.mxu0 %v163
    %785 = vmatpush1.msra.mxu0 %v162
    %786 = vmatprep.subr.mxu0 %v167
    %787 = vmatpush1.msra.mxu0 %v166
    %788 = vmatprep.subr.mxu0 %v171
    %789 = vmatpush1.msra.mxu0 %v170
    %790 = vmatprep.subr.mxu0 %v175
    %791 = vmatpush1.msra.mxu0 %v174
    %792 = vmatprep.subr.mxu0 %v179
    %793 = vmatpush1.msra.mxu0 %v178
    %794 = vmatprep.subr.mxu0 %v183
    %795 = vmatpush1.msra.mxu0 %v182
    %796 = vmatprep.subr.mxu0 %v187
    %797 = vmatpush1.msra.mxu0 %v186
    %798 = vmatprep.subr.mxu0 %v191
    %799 = vmatpush1.msra.mxu0 %v190
    %800 = vmatprep.subr.mxu0 %v195
    %801 = vmatpush1.msra.mxu0 %v194
    %802 = vmatprep.subr.mxu0 %v199
    %803 = vmatpush1.msra.mxu0 %v198
    %804 = vmatprep.subr.mxu0 %v203
    %805 = vmatpush1.msra.mxu0 %v202
    %806 = vmatprep.subr.mxu0 %v207
    %807 = vmatpush1.msra.mxu0 %v206
    %808 = vmatprep.subr.mxu0 %v211
    %809 = vmatpush1.msra.mxu0 %v210
    %810 = vmatprep.subr.mxu0 %v215
    %811 = vmatpush1.msra.mxu0 %v214
    %812 = vmatprep.subr.mxu0 %v219
    %813 = vmatpush1.msra.mxu0 %v218
    %814 = vmatprep.mubr.f32.mxu0 %v85
    %815 = vmatmul.mubr.f32.gmra.mrb[0].mxu0 %v84
    %v816 = vpop.f32.mrb[0].mxu0
    %v817 = vadd.f32 0.0, %v816
    %v818 = vpop.f32.mrb[0].mxu0
    %v819 = vadd.f32 0.0, %v818
    %820 = vdwg.mxu0
    %821 = vmatprep.subr.mxu0 %v223
    %822 = vmatpush1.msra.mxu0 %v222
    %823 = vmatprep.subr.mxu0 %v227
    %824 = vmatpush1.msra.mxu0 %v226
    %825 = vmatprep.subr.mxu0 %v231
    %826 = vmatpush1.msra.mxu0 %v230
    %827 = vmatprep.subr.mxu0 %v235
    %828 = vmatpush1.msra.mxu0 %v234
    %829 = vmatprep.subr.mxu0 %v239
    %830 = vmatpush1.msra.mxu0 %v238
    %831 = vmatprep.subr.mxu0 %v243
    %832 = vmatpush1.msra.mxu0 %v242
    %833 = vmatprep.subr.mxu0 %v247
    %834 = vmatpush1.msra.mxu0 %v246
    %835 = vmatprep.subr.mxu0 %v251
    %836 = vmatpush1.msra.mxu0 %v250
    %837 = vmatprep.subr.mxu0 %v255
    %838 = vmatpush1.msra.mxu0 %v254
    %839 = vmatprep.subr.mxu0 %v259
    %840 = vmatpush1.msra.mxu0 %v258
    %841 = vmatprep.subr.mxu0 %v263
    %842 = vmatpush1.msra.mxu0 %v262
    %843 = vmatprep.subr.mxu0 %v267
    %844 = vmatpush1.msra.mxu0 %v266
    %845 = vmatprep.subr.mxu0 %v271
    %846 = vmatpush1.msra.mxu0 %v270
    %847 = vmatprep.subr.mxu0 %v275
    %848 = vmatpush1.msra.mxu0 %v274
    %849 = vmatprep.subr.mxu0 %v279
    %850 = vmatpush1.msra.mxu0 %v278
    %851 = vmatprep.subr.mxu0 %v283
    %852 = vmatpush1.msra.mxu0 %v282
    %853 = vmatprep.subr.mxu0 %v287
    %854 = vmatpush1.msra.mxu0 %v286
    %855 = vmatprep.subr.mxu0 %v291
    %856 = vmatpush1.msra.mxu0 %v290
    %857 = vmatprep.subr.mxu0 %v295
    %858 = vmatpush1.msra.mxu0 %v294
    %859 = vmatprep.subr.mxu0 %v299
    %860 = vmatpush1.msra.mxu0 %v298
    %861 = vmatprep.subr.mxu0 %v303
    %862 = vmatpush1.msra.mxu0 %v302
    %863 = vmatprep.subr.mxu0 %v307
    %864 = vmatpush1.msra.mxu0 %v306
    %865 = vmatprep.subr.mxu0 %v311
    %866 = vmatpush1.msra.mxu0 %v310
    %867 = vmatprep.subr.mxu0 %v315
    %868 = vmatpush1.msra.mxu0 %v314
    %869 = vmatprep.subr.mxu0 %v319
    %870 = vmatpush1.msra.mxu0 %v318
    %871 = vmatprep.subr.mxu0 %v323
    %872 = vmatpush1.msra.mxu0 %v322
    %873 = vmatprep.subr.mxu0 %v327
    %874 = vmatpush1.msra.mxu0 %v326
    %875 = vmatprep.subr.mxu0 %v331
    %876 = vmatpush1.msra.mxu0 %v330
    %877 = vmatprep.subr.mxu0 %v335
    %878 = vmatpush1.msra.mxu0 %v334
    %879 = vmatprep.subr.mxu0 %v339
    %880 = vmatpush1.msra.mxu0 %v338
    %881 = vmatprep.subr.mxu0 %v343
    %882 = vmatpush1.msra.mxu0 %v342
    %883 = vmatprep.subr.mxu0 %v347
    %884 = vmatpush1.msra.mxu0 %v346
    %885 = vmatprep.mubr.f32.mxu0 %v87
    %886 = vmatmul.mubr.f32.gmra.mrb[0].mxu0 %v86
    %v887 = vpop.f32.mrb[0].mxu0
    %v888 = vadd.f32 %v817, %v887
    %v889 = vpop.f32.mrb[0].mxu0
    %v890 = vadd.f32 %v819, %v889
    %891 = vdwg.mxu0
    %892 = vmatprep.subr.mxu0 %v349
    %893 = vmatpush1.msra.mxu0 %v348
    %894 = vmatprep.subr.mxu0 %v353
    %895 = vmatpush1.msra.mxu0 %v352
    %896 = vmatprep.subr.mxu0 %v357
    %897 = vmatpush1.msra.mxu0 %v356
    %898 = vmatprep.subr.mxu0 %v361
    %899 = vmatpush1.msra.mxu0 %v360
    %900 = vmatprep.subr.mxu0 %v365
    %901 = vmatpush1.msra.mxu0 %v364
    %902 = vmatprep.subr.mxu0 %v369
    %903 = vmatpush1.msra.mxu0 %v368
    %904 = vmatprep.subr.mxu0 %v373
    %905 = vmatpush1.msra.mxu0 %v372
    %906 = vmatprep.subr.mxu0 %v377
    %907 = vmatpush1.msra.mxu0 %v376
    %908 = vmatprep.subr.mxu0 %v381
    %909 = vmatpush1.msra.mxu0 %v380
    %910 = vmatprep.subr.mxu0 %v385
    %911 = vmatpush1.msra.mxu0 %v384
    %912 = vmatprep.subr.mxu0 %v389
    %913 = vmatpush1.msra.mxu0 %v388
    %914 = vmatprep.subr.mxu0 %v393
    %915 = vmatpush1.msra.mxu0 %v392
    %916 = vmatprep.subr.mxu0 %v397
    %917 = vmatpush1.msra.mxu0 %v396
    %918 = vmatprep.subr.mxu0 %v401
    %919 = vmatpush1.msra.mxu0 %v400
    %920 = vmatprep.subr.mxu0 %v405
    %921 = vmatpush1.msra.mxu0 %v404
    %922 = vmatprep.subr.mxu0 %v409
    %923 = vmatpush1.msra.mxu0 %v408
    %924 = vmatprep.subr.mxu0 %v413
    %925 = vmatpush1.msra.mxu0 %v412
    %926 = vmatprep.subr.mxu0 %v417
    %927 = vmatpush1.msra.mxu0 %v416
    %928 = vmatprep.subr.mxu0 %v421
    %929 = vmatpush1.msra.mxu0 %v420
    %930 = vmatprep.subr.mxu0 %v425
    %931 = vmatpush1.msra.mxu0 %v424
    %932 = vmatprep.subr.mxu0 %v429
    %933 = vmatpush1.msra.mxu0 %v428
    %934 = vmatprep.subr.mxu0 %v433
    %935 = vmatpush1.msra.mxu0 %v432
    %936 = vmatprep.subr.mxu0 %v437
    %937 = vmatpush1.msra.mxu0 %v436
    %938 = vmatprep.subr.mxu0 %v441
    %939 = vmatpush1.msra.mxu0 %v440
    %940 = vmatprep.subr.mxu0 %v445
    %941 = vmatpush1.msra.mxu0 %v444
    %942 = vmatprep.subr.mxu0 %v449
    %943 = vmatpush1.msra.mxu0 %v448
    %944 = vmatprep.subr.mxu0 %v453
    %945 = vmatpush1.msra.mxu0 %v452
    %946 = vmatprep.subr.mxu0 %v457
    %947 = vmatpush1.msra.mxu0 %v456
    %948 = vmatprep.subr.mxu0 %v461
    %949 = vmatpush1.msra.mxu0 %v460
    %950 = vmatprep.subr.mxu0 %v465
    %951 = vmatpush1.msra.mxu0 %v464
    %952 = vmatprep.subr.mxu0 %v469
    %953 = vmatpush1.msra.mxu0 %v468
    %954 = vmatprep.subr.mxu0 %v473
    %955 = vmatpush1.msra.mxu0 %v472
    %956 = vmatprep.mubr.f32.mxu0 %v89
    %957 = vmatmul.mubr.f32.gmra.mrb[0].mxu0 %v88
    %v958 = vpop.f32.mrb[0].mxu0
    %v959 = vadd.f32 0.0, %v958
    %v960 = vpop.f32.mrb[0].mxu0
    %v961 = vadd.f32 0.0, %v960
    %962 = vdwg.mxu0
    %963 = vmatprep.subr.mxu0 %v477
    %964 = vmatpush1.msra.mxu0 %v476
    %965 = vmatprep.subr.mxu0 %v481
    %966 = vmatpush1.msra.mxu0 %v480
    %967 = vmatprep.subr.mxu0 %v485
    %968 = vmatpush1.msra.mxu0 %v484
    %969 = vmatprep.subr.mxu0 %v489
    %970 = vmatpush1.msra.mxu0 %v488
    %971 = vmatprep.subr.mxu0 %v493
    %972 = vmatpush1.msra.mxu0 %v492
    %973 = vmatprep.subr.mxu0 %v497
    %974 = vmatpush1.msra.mxu0 %v496
    %975 = vmatprep.subr.mxu0 %v501
    %976 = vmatpush1.msra.mxu0 %v500
    %977 = vmatprep.subr.mxu0 %v505
    %978 = vmatpush1.msra.mxu0 %v504
    %979 = vmatprep.subr.mxu0 %v509
    %980 = vmatpush1.msra.mxu0 %v508
    %981 = vmatprep.subr.mxu0 %v513
    %982 = vmatpush1.msra.mxu0 %v512
    %983 = vmatprep.subr.mxu0 %v517
    %984 = vmatpush1.msra.mxu0 %v516
    %985 = vmatprep.subr.mxu0 %v521
    %986 = vmatpush1.msra.mxu0 %v520
    %987 = vmatprep.subr.mxu0 %v525
    %988 = vmatpush1.msra.mxu0 %v524
    %989 = vmatprep.subr.mxu0 %v529
    %990 = vmatpush1.msra.mxu0 %v528
    %991 = vmatprep.subr.mxu0 %v533
    %992 = vmatpush1.msra.mxu0 %v532
    %993 = vmatprep.subr.mxu0 %v537
    %994 = vmatpush1.msra.mxu0 %v536
    %995 = vmatprep.subr.mxu0 %v541
    %996 = vmatpush1.msra.mxu0 %v540
    %997 = vmatprep.subr.mxu0 %v545
    %998 = vmatpush1.msra.mxu0 %v544
    %999 = vmatprep.subr.mxu0 %v549
    %1000 = vmatpush1.msra.mxu0 %v548
    %1001 = vmatprep.subr.mxu0 %v553
    %1002 = vmatpush1.msra.mxu0 %v552
    %1003 = vmatprep.subr.mxu0 %v557
    %1004 = vmatpush1.msra.mxu0 %v556
    %1005 = vmatprep.subr.mxu0 %v561
    %1006 = vmatpush1.msra.mxu0 %v560
    %1007 = vmatprep.subr.mxu0 %v565
    %1008 = vmatpush1.msra.mxu0 %v564
    %1009 = vmatprep.subr.mxu0 %v569
    %1010 = vmatpush1.msra.mxu0 %v568
    %1011 = vmatprep.subr.mxu0 %v573
    %1012 = vmatpush1.msra.mxu0 %v572
    %1013 = vmatprep.subr.mxu0 %v577
    %1014 = vmatpush1.msra.mxu0 %v576
    %1015 = vmatprep.subr.mxu0 %v581
    %1016 = vmatpush1.msra.mxu0 %v580
    %1017 = vmatprep.subr.mxu0 %v585
    %1018 = vmatpush1.msra.mxu0 %v584
    %1019 = vmatprep.subr.mxu0 %v589
    %1020 = vmatpush1.msra.mxu0 %v588
    %1021 = vmatprep.subr.mxu0 %v593
    %1022 = vmatpush1.msra.mxu0 %v592
    %1023 = vmatprep.subr.mxu0 %v597
    %1024 = vmatpush1.msra.mxu0 %v596
    %1025 = vmatprep.subr.mxu0 %v601
    %1026 = vmatpush1.msra.mxu0 %v600
    %1027 = vmatprep.mubr.f32.mxu0 %v91
    %1028 = vmatmul.mubr.f32.gmra.mrb[0].mxu0 %v90
    %v1029 = vpop.f32.mrb[0].mxu0
    %v1030 = vadd.f32 %v959, %v1029
    %v1031 = vpop.f32.mrb[0].mxu0
    %v1032 = vadd.f32 %v961, %v1031
    %1033 = vdwg.mxu0
    %1034 = vmatprep.subr.mxu0 %v351
    %1035 = vmatpush1.msra.mxu0 %v350
    %1036 = vmatprep.subr.mxu0 %v355
    %1037 = vmatpush1.msra.mxu0 %v354
    %1038 = vmatprep.subr.mxu0 %v359
    %1039 = vmatpush1.msra.mxu0 %v358
    %1040 = vmatprep.subr.mxu0 %v363
    %1041 = vmatpush1.msra.mxu0 %v362
    %1042 = vmatprep.subr.mxu0 %v367
    %1043 = vmatpush1.msra.mxu0 %v366
    %1044 = vmatprep.subr.mxu0 %v371
    %1045 = vmatpush1.msra.mxu0 %v370
    %1046 = vmatprep.subr.mxu0 %v375
    %1047 = vmatpush1.msra.mxu0 %v374
    %1048 = vmatprep.subr.mxu0 %v379
    %1049 = vmatpush1.msra.mxu0 %v378
    %1050 = vmatprep.subr.mxu0 %v383
    %1051 = vmatpush1.msra.mxu0 %v382
    %1052 = vmatprep.subr.mxu0 %v387
    %1053 = vmatpush1.msra.mxu0 %v386
    %1054 = vmatprep.subr.mxu0 %v391
    %1055 = vmatpush1.msra.mxu0 %v390
    %1056 = vmatprep.subr.mxu0 %v395
    %1057 = vmatpush1.msra.mxu0 %v394
    %1058 = vmatprep.subr.mxu0 %v399
    %1059 = vmatpush1.msra.mxu0 %v398
    %1060 = vmatprep.subr.mxu0 %v403
    %1061 = vmatpush1.msra.mxu0 %v402
    %1062 = vmatprep.subr.mxu0 %v407
    %1063 = vmatpush1.msra.mxu0 %v406
    %1064 = vmatprep.subr.mxu0 %v411
    %1065 = vmatpush1.msra.mxu0 %v410
    %1066 = vmatprep.subr.mxu0 %v415
    %1067 = vmatpush1.msra.mxu0 %v414
    %1068 = vmatprep.subr.mxu0 %v419
    %1069 = vmatpush1.msra.mxu0 %v418
    %1070 = vmatprep.subr.mxu0 %v423
    %1071 = vmatpush1.msra.mxu0 %v422
    %1072 = vmatprep.subr.mxu0 %v427
    %1073 = vmatpush1.msra.mxu0 %v426
    %1074 = vmatprep.subr.mxu0 %v431
    %1075 = vmatpush1.msra.mxu0 %v430
    %1076 = vmatprep.subr.mxu0 %v435
    %1077 = vmatpush1.msra.mxu0 %v434
    %1078 = vmatprep.subr.mxu0 %v439
    %1079 = vmatpush1.msra.mxu0 %v438
    %1080 = vmatprep.subr.mxu0 %v443
    %1081 = vmatpush1.msra.mxu0 %v442
    %1082 = vmatprep.subr.mxu0 %v447
    %1083 = vmatpush1.msra.mxu0 %v446
    %1084 = vmatprep.subr.mxu0 %v451
    %1085 = vmatpush1.msra.mxu0 %v450
    %1086 = vmatprep.subr.mxu0 %v455
    %1087 = vmatpush1.msra.mxu0 %v454
    %1088 = vmatprep.subr.mxu0 %v459
    %1089 = vmatpush1.msra.mxu0 %v458
    %1090 = vmatprep.subr.mxu0 %v463
    %1091 = vmatpush1.msra.mxu0 %v462
    %1092 = vmatprep.subr.mxu0 %v467
    %1093 = vmatpush1.msra.mxu0 %v466
    %1094 = vmatprep.subr.mxu0 %v471
    %1095 = vmatpush1.msra.mxu0 %v470
    %1096 = vmatprep.subr.mxu0 %v475
    %1097 = vmatpush1.msra.mxu0 %v474
    %1098 = vmatprep.mubr.f32.mxu0 %v89
    %1099 = vmatmul.mubr.f32.gmra.mrb[0].mxu0 %v88
    %v1100 = vpop.f32.mrb[0].mxu0
    %v1101 = vadd.f32 0.0, %v1100
    %v1102 = vpop.f32.mrb[0].mxu0
    %v1103 = vadd.f32 0.0, %v1102
    %1104 = vdwg.mxu0
    %1105 = vmatprep.subr.mxu0 %v479
    %1106 = vmatpush1.msra.mxu0 %v478
    %1107 = vmatprep.subr.mxu0 %v483
    %1108 = vmatpush1.msra.mxu0 %v482
    %1109 = vmatprep.subr.mxu0 %v487
    %1110 = vmatpush1.msra.mxu0 %v486
    %1111 = vmatprep.subr.mxu0 %v491
    %1112 = vmatpush1.msra.mxu0 %v490
    %1113 = vmatprep.subr.mxu0 %v495
    %1114 = vmatpush1.msra.mxu0 %v494
    %1115 = vmatprep.subr.mxu0 %v499
    %1116 = vmatpush1.msra.mxu0 %v498
    %1117 = vmatprep.subr.mxu0 %v503
    %1118 = vmatpush1.msra.mxu0 %v502
    %1119 = vmatprep.subr.mxu0 %v507
    %1120 = vmatpush1.msra.mxu0 %v506
    %1121 = vmatprep.subr.mxu0 %v511
    %1122 = vmatpush1.msra.mxu0 %v510
    %1123 = vmatprep.subr.mxu0 %v515
    %1124 = vmatpush1.msra.mxu0 %v514
    %1125 = vmatprep.subr.mxu0 %v519
    %1126 = vmatpush1.msra.mxu0 %v518
    %1127 = vmatprep.subr.mxu0 %v523
    %1128 = vmatpush1.msra.mxu0 %v522
    %1129 = vmatprep.subr.mxu0 %v527
    %1130 = vmatpush1.msra.mxu0 %v526
    %1131 = vmatprep.subr.mxu0 %v531
    %1132 = vmatpush1.msra.mxu0 %v530
    %1133 = vmatprep.subr.mxu0 %v535
    %1134 = vmatpush1.msra.mxu0 %v534
    %1135 = vmatprep.subr.mxu0 %v539
    %1136 = vmatpush1.msra.mxu0 %v538
    %1137 = vmatprep.subr.mxu0 %v543
    %1138 = vmatpush1.msra.mxu0 %v542
    %1139 = vmatprep.subr.mxu0 %v547
    %1140 = vmatpush1.msra.mxu0 %v546
    %1141 = vmatprep.subr.mxu0 %v551
    %1142 = vmatpush1.msra.mxu0 %v550
    %1143 = vmatprep.subr.mxu0 %v555
    %1144 = vmatpush1.msra.mxu0 %v554
    %1145 = vmatprep.subr.mxu0 %v559
    %1146 = vmatpush1.msra.mxu0 %v558
    %1147 = vmatprep.subr.mxu0 %v563
    %1148 = vmatpush1.msra.mxu0 %v562
    %1149 = vmatprep.subr.mxu0 %v567
    %1150 = vmatpush1.msra.mxu0 %v566
    %1151 = vmatprep.subr.mxu0 %v571
    %1152 = vmatpush1.msra.mxu0 %v570
    %1153 = vmatprep.subr.mxu0 %v575
    %1154 = vmatpush1.msra.mxu0 %v574
    %1155 = vmatprep.subr.mxu0 %v579
    %1156 = vmatpush1.msra.mxu0 %v578
    %1157 = vmatprep.subr.mxu0 %v583
    %1158 = vmatpush1.msra.mxu0 %v582
    %1159 = vmatprep.subr.mxu0 %v587
    %1160 = vmatpush1.msra.mxu0 %v586
    %1161 = vmatprep.subr.mxu0 %v591
    %1162 = vmatpush1.msra.mxu0 %v590
    %1163 = vmatprep.subr.mxu0 %v595
    %1164 = vmatpush1.msra.mxu0 %v594
    %1165 = vmatprep.subr.mxu0 %v599
    %1166 = vmatpush1.msra.mxu0 %v598
    %1167 = vmatprep.subr.mxu0 %v603
    %1168 = vmatpush1.msra.mxu0 %v602
    %1169 = vmatprep.mubr.f32.mxu0 %v91
    %1170 = vmatmul.mubr.f32.gmra.mrb[0].mxu0 %v90
    %v1171 = vpop.f32.mrb[0].mxu0
    %v1172 = vadd.f32 %v1101, %v1171
    %v1173 = vpop.f32.mrb[0].mxu0
    %v1174 = vadd.f32 %v1103, %v1173
    %1175 = vdwg.mxu0
    %v1176 = vsub.f32 %v746, %v1030
    %v1177 = vsub.f32 %v748, %v1032
    %v1178 = vsub.f32 %v888, %v1172
    %v1179 = vsub.f32 %v890, %v1174
    %v1180 = vadd.f32 %v604, %v1176
    %v1181 = vadd.f32 %v605, %v1177
    %v1182 = vadd.f32 %v606, %v1178
    %v1183 = vadd.f32 %v607, %v1179
    %1184 = vst [vmem:[#allocation10] sm:$0xff] %v1180
    %1185 = vst [vmem:[#allocation10 + $0x8] sm:$0xff] %v1181
    %1186 = vst [vmem:[#allocation10 + $0x10] sm:$0xff] %v1182
    %1187 = vst [vmem:[#allocation10 + $0x18] sm:$0xff] %v1183
    %v1188 = vld [vmem:[#allocation11] sm:$0xff]
    %v1189 = vld [vmem:[#allocation11 + $0x8] sm:$0xff]
    %v1190 = vld [vmem:[#allocation11 + $0x10] sm:$0xff]
    %v1191 = vld [vmem:[#allocation11 + $0x18] sm:$0xff]
    %1192 = vmatprep.subr.mxu0 %v93
    %1193 = vmatpush1.msra.mxu0 %v92
    %1194 = vmatprep.subr.mxu0 %v97
    %1195 = vmatpush1.msra.mxu0 %v96
    %1196 = vmatprep.subr.mxu0 %v101
    %1197 = vmatpush1.msra.mxu0 %v100
    %1198 = vmatprep.subr.mxu0 %v105
    %1199 = vmatpush1.msra.mxu0 %v104
    %1200 = vmatprep.subr.mxu0 %v109
    %1201 = vmatpush1.msra.mxu0 %v108
    %1202 = vmatprep.subr.mxu0 %v113
    %1203 = vmatpush1.msra.mxu0 %v112
    %1204 = vmatprep.subr.mxu0 %v117
    %1205 = vmatpush1.msra.mxu0 %v116
    %1206 = vmatprep.subr.mxu0 %v121
    %1207 = vmatpush1.msra.mxu0 %v120
    %1208 = vmatprep.subr.mxu0 %v125
    %1209 = vmatpush1.msra.mxu0 %v124
    %1210 = vmatprep.subr.mxu0 %v129
    %1211 = vmatpush1.msra.mxu0 %v128
    %1212 = vmatprep.subr.mxu0 %v133
    %1213 = vmatpush1.msra.mxu0 %v132
    %1214 = vmatprep.subr.mxu0 %v137
    %1215 = vmatpush1.msra.mxu0 %v136
    %1216 = vmatprep.subr.mxu0 %v141
    %1217 = vmatpush1.msra.mxu0 %v140
    %1218 = vmatprep.subr.mxu0 %v145
    %1219 = vmatpush1.msra.mxu0 %v144
    %1220 = vmatprep.subr.mxu0 %v149
    %1221 = vmatpush1.msra.mxu0 %v148
    %1222 = vmatprep.subr.mxu0 %v153
    %1223 = vmatpush1.msra.mxu0 %v152
    %1224 = vmatprep.subr.mxu0 %v157
    %1225 = vmatpush1.msra.mxu0 %v156
    %1226 = vmatprep.subr.mxu0 %v161
    %1227 = vmatpush1.msra.mxu0 %v160
    %1228 = vmatprep.subr.mxu0 %v165
    %1229 = vmatpush1.msra.mxu0 %v164
    %1230 = vmatprep.subr.mxu0 %v169
    %1231 = vmatpush1.msra.mxu0 %v168
    %1232 = vmatprep.subr.mxu0 %v173
    %1233 = vmatpush1.msra.mxu0 %v172
    %1234 = vmatprep.subr.mxu0 %v177
    %1235 = vmatpush1.msra.mxu0 %v176
    %1236 = vmatprep.subr.mxu0 %v181
    %1237 = vmatpush1.msra.mxu0 %v180
    %1238 = vmatprep.subr.mxu0 %v185
    %1239 = vmatpush1.msra.mxu0 %v184
    %1240 = vmatprep.subr.mxu0 %v189
    %1241 = vmatpush1.msra.mxu0 %v188
    %1242 = vmatprep.subr.mxu0 %v193
    %1243 = vmatpush1.msra.mxu0 %v192
    %1244 = vmatprep.subr.mxu0 %v197
    %1245 = vmatpush1.msra.mxu0 %v196
    %1246 = vmatprep.subr.mxu0 %v201
    %1247 = vmatpush1.msra.mxu0 %v200
    %1248 = vmatprep.subr.mxu0 %v205
    %1249 = vmatpush1.msra.mxu0 %v204
    %1250 = vmatprep.subr.mxu0 %v209
    %1251 = vmatpush1.msra.mxu0 %v208
    %1252 = vmatprep.subr.mxu0 %v213
    %1253 = vmatpush1.msra.mxu0 %v212
    %1254 = vmatprep.subr.mxu0 %v217
    %1255 = vmatpush1.msra.mxu0 %v216
    %1256 = vmatprep.mubr.f32.mxu0 %v89
    %1257 = vmatmul.mubr.f32.gmra.mrb[0].mxu0 %v88
    %v1258 = vpop.f32.mrb[0].mxu0
    %v1259 = vadd.f32 0.0, %v1258
    %v1260 = vpop.f32.mrb[0].mxu0
    %v1261 = vadd.f32 0.0, %v1260
    %1262 = vdwg.mxu0
    %1263 = vmatprep.subr.mxu0 %v221
    %1264 = vmatpush1.msra.mxu0 %v220
    %1265 = vmatprep.subr.mxu0 %v225
    %1266 = vmatpush1.msra.mxu0 %v224
    %1267 = vmatprep.subr.mxu0 %v229
    %1268 = vmatpush1.msra.mxu0 %v228
    %1269 = vmatprep.subr.mxu0 %v233
    %1270 = vmatpush1.msra.mxu0 %v232
    %1271 = vmatprep.subr.mxu0 %v237
    %1272 = vmatpush1.msra.mxu0 %v236
    %1273 = vmatprep.subr.mxu0 %v241
    %1274 = vmatpush1.msra.mxu0 %v240
    %1275 = vmatprep.subr.mxu0 %v245
    %1276 = vmatpush1.msra.mxu0 %v244
    %1277 = vmatprep.subr.mxu0 %v249
    %1278 = vmatpush1.msra.mxu0 %v248
    %1279 = vmatprep.subr.mxu0 %v253
    %1280 = vmatpush1.msra.mxu0 %v252
    %1281 = vmatprep.subr.mxu0 %v257
    %1282 = vmatpush1.msra.mxu0 %v256
    %1283 = vmatprep.subr.mxu0 %v261
    %1284 = vmatpush1.msra.mxu0 %v260
    %1285 = vmatprep.subr.mxu0 %v265
    %1286 = vmatpush1.msra.mxu0 %v264
    %1287 = vmatprep.subr.mxu0 %v269
    %1288 = vmatpush1.msra.mxu0 %v268
    %1289 = vmatprep.subr.mxu0 %v273
    %1290 = vmatpush1.msra.mxu0 %v272
    %1291 = vmatprep.subr.mxu0 %v277
    %1292 = vmatpush1.msra.mxu0 %v276
    %1293 = vmatprep.subr.mxu0 %v281
    %1294 = vmatpush1.msra.mxu0 %v280
    %1295 = vmatprep.subr.mxu0 %v285
    %1296 = vmatpush1.msra.mxu0 %v284
    %1297 = vmatprep.subr.mxu0 %v289
    %1298 = vmatpush1.msra.mxu0 %v288
    %1299 = vmatprep.subr.mxu0 %v293
    %1300 = vmatpush1.msra.mxu0 %v292
    %1301 = vmatprep.subr.mxu0 %v297
    %1302 = vmatpush1.msra.mxu0 %v296
    %1303 = vmatprep.subr.mxu0 %v301
    %1304 = vmatpush1.msra.mxu0 %v300
    %1305 = vmatprep.subr.mxu0 %v305
    %1306 = vmatpush1.msra.mxu0 %v304
    %1307 = vmatprep.subr.mxu0 %v309
    %1308 = vmatpush1.msra.mxu0 %v308
    %1309 = vmatprep.subr.mxu0 %v313
    %1310 = vmatpush1.msra.mxu0 %v312
    %1311 = vmatprep.subr.mxu0 %v317
    %1312 = vmatpush1.msra.mxu0 %v316
    %1313 = vmatprep.subr.mxu0 %v321
    %1314 = vmatpush1.msra.mxu0 %v320
    %1315 = vmatprep.subr.mxu0 %v325
    %1316 = vmatpush1.msra.mxu0 %v324
    %1317 = vmatprep.subr.mxu0 %v329
    %1318 = vmatpush1.msra.mxu0 %v328
    %1319 = vmatprep.subr.mxu0 %v333
    %1320 = vmatpush1.msra.mxu0 %v332
    %1321 = vmatprep.subr.mxu0 %v337
    %1322 = vmatpush1.msra.mxu0 %v336
    %1323 = vmatprep.subr.mxu0 %v341
    %1324 = vmatpush1.msra.mxu0 %v340
    %1325 = vmatprep.subr.mxu0 %v345
    %1326 = vmatpush1.msra.mxu0 %v344
    %1327 = vmatprep.mubr.f32.mxu0 %v91
    %1328 = vmatmul.mubr.f32.gmra.mrb[0].mxu0 %v90
    %v1329 = vpop.f32.mrb[0].mxu0
    %v1330 = vadd.f32 %v1259, %v1329
    %v1331 = vpop.f32.mrb[0].mxu0
    %v1332 = vadd.f32 %v1261, %v1331
    %1333 = vdwg.mxu0
    %1334 = vmatprep.subr.mxu0 %v95
    %1335 = vmatpush1.msra.mxu0 %v94
    %1336 = vmatprep.subr.mxu0 %v99
    %1337 = vmatpush1.msra.mxu0 %v98
    %1338 = vmatprep.subr.mxu0 %v103
    %1339 = vmatpush1.msra.mxu0 %v102
    %1340 = vmatprep.subr.mxu0 %v107
    %1341 = vmatpush1.msra.mxu0 %v106
    %1342 = vmatprep.subr.mxu0 %v111
    %1343 = vmatpush1.msra.mxu0 %v110
    %1344 = vmatprep.subr.mxu0 %v115
    %1345 = vmatpush1.msra.mxu0 %v114
    %1346 = vmatprep.subr.mxu0 %v119
    %1347 = vmatpush1.msra.mxu0 %v118
    %1348 = vmatprep.subr.mxu0 %v123
    %1349 = vmatpush1.msra.mxu0 %v122
    %1350 = vmatprep.subr.mxu0 %v127
    %1351 = vmatpush1.msra.mxu0 %v126
    %1352 = vmatprep.subr.mxu0 %v131
    %1353 = vmatpush1.msra.mxu0 %v130
    %1354 = vmatprep.subr.mxu0 %v135
    %1355 = vmatpush1.msra.mxu0 %v134
    %1356 = vmatprep.subr.mxu0 %v139
    %1357 = vmatpush1.msra.mxu0 %v138
    %1358 = vmatprep.subr.mxu0 %v143
    %1359 = vmatpush1.msra.mxu0 %v142
    %1360 = vmatprep.subr.mxu0 %v147
    %1361 = vmatpush1.msra.mxu0 %v146
    %1362 = vmatprep.subr.mxu0 %v151
    %1363 = vmatpush1.msra.mxu0 %v150
    %1364 = vmatprep.subr.mxu0 %v155
    %1365 = vmatpush1.msra.mxu0 %v154
    %1366 = vmatprep.subr.mxu0 %v159
    %1367 = vmatpush1.msra.mxu0 %v158
    %1368 = vmatprep.subr.mxu0 %v163
    %1369 = vmatpush1.msra.mxu0 %v162
    %1370 = vmatprep.subr.mxu0 %v167
    %1371 = vmatpush1.msra.mxu0 %v166
    %1372 = vmatprep.subr.mxu0 %v171
    %1373 = vmatpush1.msra.mxu0 %v170
    %1374 = vmatprep.subr.mxu0 %v175
    %1375 = vmatpush1.msra.mxu0 %v174
    %1376 = vmatprep.subr.mxu0 %v179
    %1377 = vmatpush1.msra.mxu0 %v178
    %1378 = vmatprep.subr.mxu0 %v183
    %1379 = vmatpush1.msra.mxu0 %v182
    %1380 = vmatprep.subr.mxu0 %v187
    %1381 = vmatpush1.msra.mxu0 %v186
    %1382 = vmatprep.subr.mxu0 %v191
    %1383 = vmatpush1.msra.mxu0 %v190
    %1384 = vmatprep.subr.mxu0 %v195
    %1385 = vmatpush1.msra.mxu0 %v194
    %1386 = vmatprep.subr.mxu0 %v199
    %1387 = vmatpush1.msra.mxu0 %v198
    %1388 = vmatprep.subr.mxu0 %v203
    %1389 = vmatpush1.msra.mxu0 %v202
    %1390 = vmatprep.subr.mxu0 %v207
    %1391 = vmatpush1.msra.mxu0 %v206
    %1392 = vmatprep.subr.mxu0 %v211
    %1393 = vmatpush1.msra.mxu0 %v210
    %1394 = vmatprep.subr.mxu0 %v215
    %1395 = vmatpush1.msra.mxu0 %v214
    %1396 = vmatprep.subr.mxu0 %v219
    %1397 = vmatpush1.msra.mxu0 %v218
    %1398 = vmatprep.mubr.f32.mxu0 %v89
    %1399 = vmatmul.mubr.f32.gmra.mrb[0].mxu0 %v88
    %v1400 = vpop.f32.mrb[0].mxu0
    %v1401 = vadd.f32 0.0, %v1400
    %v1402 = vpop.f32.mrb[0].mxu0
    %v1403 = vadd.f32 0.0, %v1402
    %1404 = vdwg.mxu0
    %1405 = vmatprep.subr.mxu0 %v223
    %1406 = vmatpush1.msra.mxu0 %v222
    %1407 = vmatprep.subr.mxu0 %v227
    %1408 = vmatpush1.msra.mxu0 %v226
    %1409 = vmatprep.subr.mxu0 %v231
    %1410 = vmatpush1.msra.mxu0 %v230
    %1411 = vmatprep.subr.mxu0 %v235
    %1412 = vmatpush1.msra.mxu0 %v234
    %1413 = vmatprep.subr.mxu0 %v239
    %1414 = vmatpush1.msra.mxu0 %v238
    %1415 = vmatprep.subr.mxu0 %v243
    %1416 = vmatpush1.msra.mxu0 %v242
    %1417 = vmatprep.subr.mxu0 %v247
    %1418 = vmatpush1.msra.mxu0 %v246
    %1419 = vmatprep.subr.mxu0 %v251
    %1420 = vmatpush1.msra.mxu0 %v250
    %1421 = vmatprep.subr.mxu0 %v255
    %1422 = vmatpush1.msra.mxu0 %v254
    %1423 = vmatprep.subr.mxu0 %v259
    %1424 = vmatpush1.msra.mxu0 %v258
    %1425 = vmatprep.subr.mxu0 %v263
    %1426 = vmatpush1.msra.mxu0 %v262
    %1427 = vmatprep.subr.mxu0 %v267
    %1428 = vmatpush1.msra.mxu0 %v266
    %1429 = vmatprep.subr.mxu0 %v271
    %1430 = vmatpush1.msra.mxu0 %v270
    %1431 = vmatprep.subr.mxu0 %v275
    %1432 = vmatpush1.msra.mxu0 %v274
    %1433 = vmatprep.subr.mxu0 %v279
    %1434 = vmatpush1.msra.mxu0 %v278
    %1435 = vmatprep.subr.mxu0 %v283
    %1436 = vmatpush1.msra.mxu0 %v282
    %1437 = vmatprep.subr.mxu0 %v287
    %1438 = vmatpush1.msra.mxu0 %v286
    %1439 = vmatprep.subr.mxu0 %v291
    %1440 = vmatpush1.msra.mxu0 %v290
    %1441 = vmatprep.subr.mxu0 %v295
    %1442 = vmatpush1.msra.mxu0 %v294
    %1443 = vmatprep.subr.mxu0 %v299
    %1444 = vmatpush1.msra.mxu0 %v298
    %1445 = vmatprep.subr.mxu0 %v303
    %1446 = vmatpush1.msra.mxu0 %v302
    %1447 = vmatprep.subr.mxu0 %v307
    %1448 = vmatpush1.msra.mxu0 %v306
    %1449 = vmatprep.subr.mxu0 %v311
    %1450 = vmatpush1.msra.mxu0 %v310
    %1451 = vmatprep.subr.mxu0 %v315
    %1452 = vmatpush1.msra.mxu0 %v314
    %1453 = vmatprep.subr.mxu0 %v319
    %1454 = vmatpush1.msra.mxu0 %v318
    %1455 = vmatprep.subr.mxu0 %v323
    %1456 = vmatpush1.msra.mxu0 %v322
    %1457 = vmatprep.subr.mxu0 %v327
    %1458 = vmatpush1.msra.mxu0 %v326
    %1459 = vmatprep.subr.mxu0 %v331
    %1460 = vmatpush1.msra.mxu0 %v330
    %1461 = vmatprep.subr.mxu0 %v335
    %1462 = vmatpush1.msra.mxu0 %v334
    %1463 = vmatprep.subr.mxu0 %v339
    %1464 = vmatpush1.msra.mxu0 %v338
    %1465 = vmatprep.subr.mxu0 %v343
    %1466 = vmatpush1.msra.mxu0 %v342
    %1467 = vmatprep.subr.mxu0 %v347
    %1468 = vmatpush1.msra.mxu0 %v346
    %1469 = vmatprep.mubr.f32.mxu0 %v91
    %1470 = vmatmul.mubr.f32.gmra.mrb[0].mxu0 %v90
    %v1471 = vpop.f32.mrb[0].mxu0
    %v1472 = vadd.f32 %v1401, %v1471
    %v1473 = vpop.f32.mrb[0].mxu0
    %v1474 = vadd.f32 %v1403, %v1473
    %1475 = vdwg.mxu0
    %1476 = vmatprep.subr.mxu0 %v349
    %1477 = vmatpush1.msra.mxu0 %v348
    %1478 = vmatprep.subr.mxu0 %v353
    %1479 = vmatpush1.msra.mxu0 %v352
    %1480 = vmatprep.subr.mxu0 %v357
    %1481 = vmatpush1.msra.mxu0 %v356
    %1482 = vmatprep.subr.mxu0 %v361
    %1483 = vmatpush1.msra.mxu0 %v360
    %1484 = vmatprep.subr.mxu0 %v365
    %1485 = vmatpush1.msra.mxu0 %v364
    %1486 = vmatprep.subr.mxu0 %v369
    %1487 = vmatpush1.msra.mxu0 %v368
    %1488 = vmatprep.subr.mxu0 %v373
    %1489 = vmatpush1.msra.mxu0 %v372
    %1490 = vmatprep.subr.mxu0 %v377
    %1491 = vmatpush1.msra.mxu0 %v376
    %1492 = vmatprep.subr.mxu0 %v381
    %1493 = vmatpush1.msra.mxu0 %v380
    %1494 = vmatprep.subr.mxu0 %v385
    %1495 = vmatpush1.msra.mxu0 %v384
    %1496 = vmatprep.subr.mxu0 %v389
    %1497 = vmatpush1.msra.mxu0 %v388
    %1498 = vmatprep.subr.mxu0 %v393
    %1499 = vmatpush1.msra.mxu0 %v392
    %1500 = vmatprep.subr.mxu0 %v397
    %1501 = vmatpush1.msra.mxu0 %v396
    %1502 = vmatprep.subr.mxu0 %v401
    %1503 = vmatpush1.msra.mxu0 %v400
    %1504 = vmatprep.subr.mxu0 %v405
    %1505 = vmatpush1.msra.mxu0 %v404
    %1506 = vmatprep.subr.mxu0 %v409
    %1507 = vmatpush1.msra.mxu0 %v408
    %1508 = vmatprep.subr.mxu0 %v413
    %1509 = vmatpush1.msra.mxu0 %v412
    %1510 = vmatprep.subr.mxu0 %v417
    %1511 = vmatpush1.msra.mxu0 %v416
    %1512 = vmatprep.subr.mxu0 %v421
    %1513 = vmatpush1.msra.mxu0 %v420
    %1514 = vmatprep.subr.mxu0 %v425
    %1515 = vmatpush1.msra.mxu0 %v424
    %1516 = vmatprep.subr.mxu0 %v429
    %1517 = vmatpush1.msra.mxu0 %v428
    %1518 = vmatprep.subr.mxu0 %v433
    %1519 = vmatpush1.msra.mxu0 %v432
    %1520 = vmatprep.subr.mxu0 %v437
    %1521 = vmatpush1.msra.mxu0 %v436
    %1522 = vmatprep.subr.mxu0 %v441
    %1523 = vmatpush1.msra.mxu0 %v440
    %1524 = vmatprep.subr.mxu0 %v445
    %1525 = vmatpush1.msra.mxu0 %v444
    %1526 = vmatprep.subr.mxu0 %v449
    %1527 = vmatpush1.msra.mxu0 %v448
    %1528 = vmatprep.subr.mxu0 %v453
    %1529 = vmatpush1.msra.mxu0 %v452
    %1530 = vmatprep.subr.mxu0 %v457
    %1531 = vmatpush1.msra.mxu0 %v456
    %1532 = vmatprep.subr.mxu0 %v461
    %1533 = vmatpush1.msra.mxu0 %v460
    %1534 = vmatprep.subr.mxu0 %v465
    %1535 = vmatpush1.msra.mxu0 %v464
    %1536 = vmatprep.subr.mxu0 %v469
    %1537 = vmatpush1.msra.mxu0 %v468
    %1538 = vmatprep.subr.mxu0 %v473
    %1539 = vmatpush1.msra.mxu0 %v472
    %1540 = vmatprep.mubr.f32.mxu0 %v85
    %1541 = vmatmul.mubr.f32.gmra.mrb[0].mxu0 %v84
    %v1542 = vpop.f32.mrb[0].mxu0
    %v1543 = vadd.f32 %v1330, %v1542
    %v1544 = vpop.f32.mrb[0].mxu0
    %v1545 = vadd.f32 %v1332, %v1544
    %1546 = vdwg.mxu0
    %1547 = vmatprep.subr.mxu0 %v477
    %1548 = vmatpush1.msra.mxu0 %v476
    %1549 = vmatprep.subr.mxu0 %v481
    %1550 = vmatpush1.msra.mxu0 %v480
    %1551 = vmatprep.subr.mxu0 %v485
    %1552 = vmatpush1.msra.mxu0 %v484
    %1553 = vmatprep.subr.mxu0 %v489
    %1554 = vmatpush1.msra.mxu0 %v488
    %1555 = vmatprep.subr.mxu0 %v493
    %1556 = vmatpush1.msra.mxu0 %v492
    %1557 = vmatprep.subr.mxu0 %v497
    %1558 = vmatpush1.msra.mxu0 %v496
    %1559 = vmatprep.subr.mxu0 %v501
    %1560 = vmatpush1.msra.mxu0 %v500
    %1561 = vmatprep.subr.mxu0 %v505
    %1562 = vmatpush1.msra.mxu0 %v504
    %1563 = vmatprep.subr.mxu0 %v509
    %1564 = vmatpush1.msra.mxu0 %v508
    %1565 = vmatprep.subr.mxu0 %v513
    %1566 = vmatpush1.msra.mxu0 %v512
    %1567 = vmatprep.subr.mxu0 %v517
    %1568 = vmatpush1.msra.mxu0 %v516
    %1569 = vmatprep.subr.mxu0 %v521
    %1570 = vmatpush1.msra.mxu0 %v520
    %1571 = vmatprep.subr.mxu0 %v525
    %1572 = vmatpush1.msra.mxu0 %v524
    %1573 = vmatprep.subr.mxu0 %v529
    %1574 = vmatpush1.msra.mxu0 %v528
    %1575 = vmatprep.subr.mxu0 %v533
    %1576 = vmatpush1.msra.mxu0 %v532
    %1577 = vmatprep.subr.mxu0 %v537
    %1578 = vmatpush1.msra.mxu0 %v536
    %1579 = vmatprep.subr.mxu0 %v541
    %1580 = vmatpush1.msra.mxu0 %v540
    %1581 = vmatprep.subr.mxu0 %v545
    %1582 = vmatpush1.msra.mxu0 %v544
    %1583 = vmatprep.subr.mxu0 %v549
    %1584 = vmatpush1.msra.mxu0 %v548
    %1585 = vmatprep.subr.mxu0 %v553
    %1586 = vmatpush1.msra.mxu0 %v552
    %1587 = vmatprep.subr.mxu0 %v557
    %1588 = vmatpush1.msra.mxu0 %v556
    %1589 = vmatprep.subr.mxu0 %v561
    %1590 = vmatpush1.msra.mxu0 %v560
    %1591 = vmatprep.subr.mxu0 %v565
    %1592 = vmatpush1.msra.mxu0 %v564
    %1593 = vmatprep.subr.mxu0 %v569
    %1594 = vmatpush1.msra.mxu0 %v568
    %1595 = vmatprep.subr.mxu0 %v573
    %1596 = vmatpush1.msra.mxu0 %v572
    %1597 = vmatprep.subr.mxu0 %v577
    %1598 = vmatpush1.msra.mxu0 %v576
    %1599 = vmatprep.subr.mxu0 %v581
    %1600 = vmatpush1.msra.mxu0 %v580
    %1601 = vmatprep.subr.mxu0 %v585
    %1602 = vmatpush1.msra.mxu0 %v584
    %1603 = vmatprep.subr.mxu0 %v589
    %1604 = vmatpush1.msra.mxu0 %v588
    %1605 = vmatprep.subr.mxu0 %v593
    %1606 = vmatpush1.msra.mxu0 %v592
    %1607 = vmatprep.subr.mxu0 %v597
    %1608 = vmatpush1.msra.mxu0 %v596
    %1609 = vmatprep.subr.mxu0 %v601
    %1610 = vmatpush1.msra.mxu0 %v600
    %1611 = vmatprep.mubr.f32.mxu0 %v87
    %1612 = vmatmul.mubr.f32.gmra.mrb[0].mxu0 %v86
    %v1613 = vpop.f32.mrb[0].mxu0
    %v1614 = vadd.f32 %v1543, %v1613
    %v1615 = vpop.f32.mrb[0].mxu0
    %v1616 = vadd.f32 %v1545, %v1615
    %1617 = vdwg.mxu0
    %1618 = vmatprep.subr.mxu0 %v351
    %1619 = vmatpush1.msra.mxu0 %v350
    %1620 = vmatprep.subr.mxu0 %v355
    %1621 = vmatpush1.msra.mxu0 %v354
    %1622 = vmatprep.subr.mxu0 %v359
    %1623 = vmatpush1.msra.mxu0 %v358
    %1624 = vmatprep.subr.mxu0 %v363
    %1625 = vmatpush1.msra.mxu0 %v362
    %1626 = vmatprep.subr.mxu0 %v367
    %1627 = vmatpush1.msra.mxu0 %v366
    %1628 = vmatprep.subr.mxu0 %v371
    %1629 = vmatpush1.msra.mxu0 %v370
    %1630 = vmatprep.subr.mxu0 %v375
    %1631 = vmatpush1.msra.mxu0 %v374
    %1632 = vmatprep.subr.mxu0 %v379
    %1633 = vmatpush1.msra.mxu0 %v378
    %1634 = vmatprep.subr.mxu0 %v383
    %1635 = vmatpush1.msra.mxu0 %v382
    %1636 = vmatprep.subr.mxu0 %v387
    %1637 = vmatpush1.msra.mxu0 %v386
    %1638 = vmatprep.subr.mxu0 %v391
    %1639 = vmatpush1.msra.mxu0 %v390
    %1640 = vmatprep.subr.mxu0 %v395
    %1641 = vmatpush1.msra.mxu0 %v394
    %1642 = vmatprep.subr.mxu0 %v399
    %1643 = vmatpush1.msra.mxu0 %v398
    %1644 = vmatprep.subr.mxu0 %v403
    %1645 = vmatpush1.msra.mxu0 %v402
    %1646 = vmatprep.subr.mxu0 %v407
    %1647 = vmatpush1.msra.mxu0 %v406
    %1648 = vmatprep.subr.mxu0 %v411
    %1649 = vmatpush1.msra.mxu0 %v410
    %1650 = vmatprep.subr.mxu0 %v415
    %1651 = vmatpush1.msra.mxu0 %v414
    %1652 = vmatprep.subr.mxu0 %v419
    %1653 = vmatpush1.msra.mxu0 %v418
    %1654 = vmatprep.subr.mxu0 %v423
    %1655 = vmatpush1.msra.mxu0 %v422
    %1656 = vmatprep.subr.mxu0 %v427
    %1657 = vmatpush1.msra.mxu0 %v426
    %1658 = vmatprep.subr.mxu0 %v431
    %1659 = vmatpush1.msra.mxu0 %v430
    %1660 = vmatprep.subr.mxu0 %v435
    %1661 = vmatpush1.msra.mxu0 %v434
    %1662 = vmatprep.subr.mxu0 %v439
    %1663 = vmatpush1.msra.mxu0 %v438
    %1664 = vmatprep.subr.mxu0 %v443
    %1665 = vmatpush1.msra.mxu0 %v442
    %1666 = vmatprep.subr.mxu0 %v447
    %1667 = vmatpush1.msra.mxu0 %v446
    %1668 = vmatprep.subr.mxu0 %v451
    %1669 = vmatpush1.msra.mxu0 %v450
    %1670 = vmatprep.subr.mxu0 %v455
    %1671 = vmatpush1.msra.mxu0 %v454
    %1672 = vmatprep.subr.mxu0 %v459
    %1673 = vmatpush1.msra.mxu0 %v458
    %1674 = vmatprep.subr.mxu0 %v463
    %1675 = vmatpush1.msra.mxu0 %v462
    %1676 = vmatprep.subr.mxu0 %v467
    %1677 = vmatpush1.msra.mxu0 %v466
    %1678 = vmatprep.subr.mxu0 %v471
    %1679 = vmatpush1.msra.mxu0 %v470
    %1680 = vmatprep.subr.mxu0 %v475
    %1681 = vmatpush1.msra.mxu0 %v474
    %1682 = vmatprep.mubr.f32.mxu0 %v85
    %1683 = vmatmul.mubr.f32.gmra.mrb[0].mxu0 %v84
    %v1684 = vpop.f32.mrb[0].mxu0
    %v1685 = vadd.f32 %v1472, %v1684
    %v1686 = vpop.f32.mrb[0].mxu0
    %v1687 = vadd.f32 %v1474, %v1686
    %1688 = vdwg.mxu0
    %1689 = vmatprep.subr.mxu0 %v479
    %1690 = vmatpush1.msra.mxu0 %v478
    %1691 = vmatprep.subr.mxu0 %v483
    %1692 = vmatpush1.msra.mxu0 %v482
    %1693 = vmatprep.subr.mxu0 %v487
    %1694 = vmatpush1.msra.mxu0 %v486
    %1695 = vmatprep.subr.mxu0 %v491
    %1696 = vmatpush1.msra.mxu0 %v490
    %1697 = vmatprep.subr.mxu0 %v495
    %1698 = vmatpush1.msra.mxu0 %v494
    %1699 = vmatprep.subr.mxu0 %v499
    %1700 = vmatpush1.msra.mxu0 %v498
    %1701 = vmatprep.subr.mxu0 %v503
    %1702 = vmatpush1.msra.mxu0 %v502
    %1703 = vmatprep.subr.mxu0 %v507
    %1704 = vmatpush1.msra.mxu0 %v506
    %1705 = vmatprep.subr.mxu0 %v511
    %1706 = vmatpush1.msra.mxu0 %v510
    %1707 = vmatprep.subr.mxu0 %v515
    %1708 = vmatpush1.msra.mxu0 %v514
    %1709 = vmatprep.subr.mxu0 %v519
    %1710 = vmatpush1.msra.mxu0 %v518
    %1711 = vmatprep.subr.mxu0 %v523
    %1712 = vmatpush1.msra.mxu0 %v522
    %1713 = vmatprep.subr.mxu0 %v527
    %1714 = vmatpush1.msra.mxu0 %v526
    %1715 = vmatprep.subr.mxu0 %v531
    %1716 = vmatpush1.msra.mxu0 %v530
    %1717 = vmatprep.subr.mxu0 %v535
    %1718 = vmatpush1.msra.mxu0 %v534
    %1719 = vmatprep.subr.mxu0 %v539
    %1720 = vmatpush1.msra.mxu0 %v538
    %1721 = vmatprep.subr.mxu0 %v543
    %1722 = vmatpush1.msra.mxu0 %v542
    %1723 = vmatprep.subr.mxu0 %v547
    %1724 = vmatpush1.msra.mxu0 %v546
    %1725 = vmatprep.subr.mxu0 %v551
    %1726 = vmatpush1.msra.mxu0 %v550
    %1727 = vmatprep.subr.mxu0 %v555
    %1728 = vmatpush1.msra.mxu0 %v554
    %1729 = vmatprep.subr.mxu0 %v559
    %1730 = vmatpush1.msra.mxu0 %v558
    %1731 = vmatprep.subr.mxu0 %v563
    %1732 = vmatpush1.msra.mxu0 %v562
    %1733 = vmatprep.subr.mxu0 %v567
    %1734 = vmatpush1.msra.mxu0 %v566
    %1735 = vmatprep.subr.mxu0 %v571
    %1736 = vmatpush1.msra.mxu0 %v570
    %1737 = vmatprep.subr.mxu0 %v575
    %1738 = vmatpush1.msra.mxu0 %v574
    %1739 = vmatprep.subr.mxu0 %v579
    %1740 = vmatpush1.msra.mxu0 %v578
    %1741 = vmatprep.subr.mxu0 %v583
    %1742 = vmatpush1.msra.mxu0 %v582
    %1743 = vmatprep.subr.mxu0 %v587
    %1744 = vmatpush1.msra.mxu0 %v586
    %1745 = vmatprep.subr.mxu0 %v591
    %1746 = vmatpush1.msra.mxu0 %v590
    %1747 = vmatprep.subr.mxu0 %v595
    %1748 = vmatpush1.msra.mxu0 %v594
    %1749 = vmatprep.subr.mxu0 %v599
    %1750 = vmatpush1.msra.mxu0 %v598
    %1751 = vmatprep.subr.mxu0 %v603
    %1752 = vmatpush1.msra.mxu0 %v602
    %1753 = vmatprep.mubr.f32.mxu0 %v87
    %1754 = vmatmul.mubr.f32.gmra.mrb[0].mxu0 %v86
    %v1755 = vpop.f32.mrb[0].mxu0
    %v1756 = vadd.f32 %v1685, %v1755
    %v1757 = vpop.f32.mrb[0].mxu0
    %v1758 = vadd.f32 %v1687, %v1757
    %1759 = vdwg.mxu0
    %v1760 = vadd.f32 %v1188, %v1614
    %v1761 = vadd.f32 %v1189, %v1616
    %v1762 = vadd.f32 %v1190, %v1756
    %v1763 = vadd.f32 %v1191, %v1758
    %1764 = vst [vmem:[#allocation11] sm:$0xff] %v1760
    %1765 = vst [vmem:[#allocation11 + $0x8] sm:$0xff] %v1761
    %1766 = vst [vmem:[#allocation11 + $0x10] sm:$0xff] %v1762
    %1767 = vst [vmem:[#allocation11 + $0x18] sm:$0xff] %v1763
    // Predicated region
    $region38: #{tpu_custom_call.1} parent=1 // pred_check
      _
    $region39: #{tpu_custom_call.1} parent=1 // pred_check_branch
      %1769 = sbr.rel (0) target = $region41
    $region40: #{tpu_custom_call.1} parent=1 // pred_region
      %s1771 = ssub.s32 512, 512
      %1772 = vsyncadd [#allocation4], %s1771
      %s1774 = sshll.u32 [#allocation10], 4
      %s1775 = int_to_ptr.vmem [resolvable:$true] %s1774
      %1777 = dma.vmem_to_hbm [thread:$0]  %s1775, 512, %s4, [#allocation4]
    $region41: #{tpu_custom_call.1} parent=1 // pred_fallthru
      _
    // Predicated region
    $region42: #{tpu_custom_call.1} parent=1 // pred_check
      _
    $region43: #{tpu_custom_call.1} parent=1 // pred_check_branch
      %1779 = sbr.rel (0) target = $region45
    $region44: #{tpu_custom_call.1} parent=1 // pred_region
      %s1781 = ssub.s32 512, 512
      %1782 = vsyncadd [#allocation12], %s1781
      %s1784 = sshll.u32 [#allocation11], 4
      %s1785 = int_to_ptr.vmem [resolvable:$true] %s1784
      %1787 = dma.vmem_to_hbm [thread:$0]  %s1785, 512, %s5, [#allocation12]
    $region45: #{tpu_custom_call.1} parent=1 // pred_fallthru
      _
    // Predicated region
    $region46: #{tpu_custom_call.1} parent=1 // pred_check
      _
    $region47: #{tpu_custom_call.1} parent=1 // pred_check_branch
      %1789 = sbr.rel (0) target = $region49
    $region48: #{tpu_custom_call.1} parent=1 // pred_region
      %1790 = dma.done [#allocation4], 512
    $region49: #{tpu_custom_call.1} parent=1 // pred_fallthru
      _
    // Predicated region
    $region50: #{tpu_custom_call.1} parent=1 // pred_check
      _
    $region51: #{tpu_custom_call.1} parent=1 // pred_check_branch
      %1792 = sbr.rel (0) target = $region53
    $region52: #{tpu_custom_call.1} parent=1 // pred_region
      %1793 = dma.done [#allocation12], 512
    $region53: #{tpu_custom_call.1} parent=1 // pred_fallthru
      _
    %1794 = vsyncpa [#allocation3], 1
    %1795 = vsyncpa [#allocation6], 1
    %1796 = vsyncpa [#allocation9], 1
    %1797 = vsyncpa [#allocation4], 1
    %1798 = vsyncpa [#allocation12], 1

</llo_original>
